<compile_context>
chip_gen: v6e
topology: v6e:2x2x1
jax: 0.10.0
libtpu: 0.0.40
codegen_flags: <defaults>
</compile_context>

<pallas_src>
import jax
import jax.numpy as jnp
from jax.experimental import pallas as pl
from jax.experimental.pallas import tpu as pltpu


def _get_q_kernel(cur_ref, nxt_ref, q_ref):
    """Per grid step: TB batches.

    cur_ref: (TB, m, 2D)  = [n_emb_cur | e_emb_cur] concatenated on features
    nxt_ref: (TB, n, 2D)  = [n_emb_nxt | e_emb_nxt] concatenated on features
    q_ref  : (TB, n, m)   = ((Kp + Kq) / 2) already in transposed (n, m) order
    """
    cur = cur_ref[...]                                  # (TB, m, 2D) f32
    nxt = nxt_ref[...]                                  # (TB, n, 2D) f32

    # Fused Gram matrix, computed directly in (n, m) orientation (no transpose
    # of the result needed):  g[b, j, i] = <nxt[b, j], cur[b, i]>  (== Kpp_g + Kqq_g)^T
    g = jnp.einsum('bjd,bid->bji', nxt, cur,
                   preferred_element_type=jnp.float32)  # (TB, n, m)

    # Fused squared row norms (== Kpp_xd* + Kqq_xd*).
    d_cur = jnp.sum(cur * cur, axis=-1)[:, None, :]     # (TB, 1, m)  indexed by i
    d_nxt = jnp.sum(nxt * nxt, axis=-1)[:, :, None]     # (TB, n, 1)  indexed by j

    # (Kp + Kq) / 2 == 0.5 * (d_cur + d_nxt) - g, already transposed to (n, m).
    q_ref[...] = 0.5 * (d_cur + d_nxt) - g


def _pick_batch_block(B, target=8):
    """Largest divisor of B that is <= target (falls back to 1)."""
    tb = min(B, target)
    while B % tb:
        tb -= 1
    return tb


def get_Q_pallas(n_emb_cur, e_emb_cur, n_emb_nxt, e_emb_nxt, batch_block=8):
    """Pallas implementation of GMNet._get_Q.

    Args (all float32):
      n_emb_cur, e_emb_cur: (B, m, D)
      n_emb_nxt, e_emb_nxt: (B, n, D)
    Returns:
      Q_t: (B, 1, n*m) -- identical to torch's (Me + Mn) / 2.0 with b_s = B > 1.
    """
    B, m, D = n_emb_cur.shape
    n = n_emb_nxt.shape[1]
    D2 = 2 * D

    # Fuse node/edge streams: one matmul with contraction K = 2D instead of two
    # with K = D; halves the input DMA streams and the norm work.
    cur = jnp.concatenate([n_emb_cur, e_emb_cur], axis=-1)   # (B, m, 2D)
    nxt = jnp.concatenate([n_emb_nxt, e_emb_nxt], axis=-1)   # (B, n, 2D)

    tb = _pick_batch_block(B, batch_block)
    grid = (B // tb,)

    # Advisory cost so XLA schedules neighbors sensibly around this small kernel.
    cost = pl.CostEstimate(
        flops=2 * B * m * n * D2 + 2 * B * (m + n) * D2 + 4 * B * m * n,
        transcendentals=0,
        bytes_accessed=4 * (B * m * D2 + B * n * D2 + B * n * m),
    )

    out = pl.pallas_call(
        _get_q_kernel,
        out_shape=jax.ShapeDtypeStruct((B, n, m), jnp.float32),
        grid_spec=pltpu.PrefetchScalarGridSpec(
            num_scalar_prefetch=0,
            grid=grid,
            in_specs=[
                pl.BlockSpec((tb, m, D2), lambda b: (b, 0, 0)),
                pl.BlockSpec((tb, n, D2), lambda b: (b, 0, 0)),
            ],
            out_specs=pl.BlockSpec((tb, n, m), lambda b: (b, 0, 0)),
        ),
        # Batch axis is fully independent -> shards across v7x's two TensorCores
        # when the grid has >= 2 steps. For realistic prob_size / large TB, add a
        # grid axis tiling n and set vmem_limit_bytes (v7x has 64 MiB VMEM,
        # half of v5e/v6e); at these sizes the per-step footprint is a few KiB.
        compiler_params=pltpu.CompilerParams(
            dimension_semantics=("parallel",),
        ),
        cost_estimate=cost,
    )(cur, nxt)

    # transpose(1,2).reshape(b, -1).unsqueeze(1) == (B, 1, n*m).
    # The kernel already stored the transposed (n, m) layout; the HBM result is
    # dense row-major, so this reshape is a zero-copy bitcast (no relayout).
    return out.reshape(B, 1, n * m)


def get_Q_ref(n_emb_cur, e_emb_cur, n_emb_nxt, e_emb_nxt):
    """Pure-JAX reference mirroring the torch _get_Q exactly."""
    B, m, _ = n_emb_cur.shape
    n = n_emb_nxt.shape[1]

    def dist(a, b):
        g = jnp.einsum('bid,bjd->bij', a, b)            # bmm(a, b^T)
        d1 = jnp.sum(a * a, axis=-1)[:, :, None]        # diag(a a^T)
        d2 = jnp.sum(b * b, axis=-1)[:, None, :]        # diag(b b^T)
        k = d1 + d2 - 2.0 * g                           # (B, m, n)
        return jnp.transpose(k, (0, 2, 1)).reshape(B, -1)

    Kp = dist(n_emb_cur, n_emb_nxt)
    Kq = dist(e_emb_cur, e_emb_nxt)
    return ((Kp + Kq) / 2.0)[:, None, :]


if __name__ == "__main__":
    # Small, deterministic problem: batch=16 (2 grid steps at TB=8),
    # prob_size m=n=8, hidden D=32.
    key = jax.random.PRNGKey(0)
    k1, k2, k3, k4 = jax.random.split(key, 4)
    B, m, n, D = 16, 8, 8, 32

    # Deterministic stand-ins for the MPNet-produced embeddings.
    n_emb_cur = jax.random.normal(k1, (B, m, D), dtype=jnp.float32)
    e_emb_cur = jax.random.normal(k2, (B, m, D), dtype=jnp.float32)
    n_emb_nxt = jax.random.normal(k3, (B, n, D), dtype=jnp.float32)
    e_emb_nxt = jax.random.normal(k4, (B, n, D), dtype=jnp.float32)

    get_q = jax.jit(get_Q_pallas)
    Q_t = get_q(n_emb_cur, e_emb_cur, n_emb_nxt, e_emb_nxt)
    Q_t = jax.block_until_ready(Q_t)

    Q_ref = get_Q_ref(n_emb_cur, e_emb_cur, n_emb_nxt, e_emb_nxt)
    assert Q_t.shape == (B, 1, m * n), Q_t.shape
    assert jnp.allclose(Q_t, Q_ref, atol=1e-4, rtol=1e-4), float(
        jnp.max(jnp.abs(Q_t - Q_ref))
    )

    # TODO(synk): downstream CvxpyLayer QP solve (x_star) is an iterative convex
    # optimizer with no Pallas equivalent; Q_t is the kernel output returned here.
    print("KERNEL_OK")
</pallas_src>

<mosaic_0001>
module attributes {stable_mosaic.version = 11 : i64} {
  func.func @_get_q_kernel(%arg0: i32, %arg1: memref<8x8x64xf32, #tpu.memory_space<vmem>>, %arg2: memref<8x8x64xf32, #tpu.memory_space<vmem>>, %arg3: memref<8x8x8xf32, #tpu.memory_space<vmem>>) attributes {dimension_semantics = [#tpu.dimension_semantics<parallel>], iteration_bounds = array<i64: 2>, scalar_prefetch = 0 : i64, scratch_operands = 0 : i64, tpu.core_type = #tpu.core_type<tc>, window_params = [{transform_indices = @transform_0, window_bounds = array<i64: 8, 8, 64>}, {transform_indices = @transform_1, window_bounds = array<i64: 8, 8, 64>}, {transform_indices = @transform_2, window_bounds = array<i64: 8, 8, 8>}]} {
    %c0 = arith.constant 0 : index
    %c0_0 = arith.constant 0 : index
    %c0_1 = arith.constant 0 : index
    %0 = vector.load %arg1[%c0, %c0_0, %c0_1] : memref<8x8x64xf32, #tpu.memory_space<vmem>>, vector<8x8x64xf32>
    %c0_2 = arith.constant 0 : index
    %c0_3 = arith.constant 0 : index
    %c0_4 = arith.constant 0 : index
    %1 = vector.load %arg2[%c0_2, %c0_3, %c0_4] : memref<8x8x64xf32, #tpu.memory_space<vmem>>, vector<8x8x64xf32>
    "tpu.trace_start"() <{level = 10 : i32, message = "bjd,bid->bji"}> : () -> ()
    %cst = arith.constant dense<0.000000e+00> : vector<8x8x8xf32>
    %2 = tpu.matmul %1, %0, %cst {dimension_numbers = #tpu.dot_dimension_numbers<[2], [2], [1], [1], [0, 0, 0, 1, 1, 1], [0], [0]>} : vector<8x8x64xf32>, vector<8x8x64xf32>, vector<8x8x8xf32> -> vector<8x8x8xf32>
    "tpu.trace_stop"() : () -> ()
    %3 = arith.mulf %0, %0 : vector<8x8x64xf32>
    %cst_5 = arith.constant dense<0.000000e+00> : vector<8x8xf32>
    %4 = vector.multi_reduction <add>, %3, %cst_5 [2] : vector<8x8x64xf32> to vector<8x8xf32>
    %5 = vector.shape_cast %4 : vector<8x8xf32> to vector<8x1x8xf32>
    %6 = arith.mulf %1, %1 : vector<8x8x64xf32>
    %cst_6 = arith.constant dense<0.000000e+00> : vector<8x8xf32>
    %7 = vector.multi_reduction <add>, %6, %cst_6 [2] : vector<8x8x64xf32> to vector<8x8xf32>
    %8 = vector.shape_cast %7 : vector<8x8xf32> to vector<8x8x1xf32>
    %9 = vector.broadcast %5 : vector<8x1x8xf32> to vector<8x8x8xf32>
    %10 = vector.broadcast %8 : vector<8x8x1xf32> to vector<8x8x8xf32>
    %11 = arith.addf %9, %10 : vector<8x8x8xf32>
    %cst_7 = arith.constant 5.000000e-01 : f32
    %12 = vector.broadcast %cst_7 : f32 to vector<8x8x8xf32>
    %13 = arith.mulf %12, %11 : vector<8x8x8xf32>
    %14 = arith.subf %13, %2 : vector<8x8x8xf32>
    %c0_8 = arith.constant 0 : index
    %c0_9 = arith.constant 0 : index
    %c0_10 = arith.constant 0 : index
    %15 = vector.load %arg3[%c0_8, %c0_9, %c0_10] : memref<8x8x8xf32, #tpu.memory_space<vmem>>, vector<8x8x8xf32>
    tpu.vector_store %arg3[%c0_8, %c0_9, %c0_10], %14 {strides = array<i32>} : memref<8x8x8xf32, #tpu.memory_space<vmem>>, vector<8x8x8xf32>,
    return
  }
  func.func @transform_0(%arg0: i32) -> (i32, i32, i32) {
    %c0_i32 = arith.constant 0 : i32
    %c0_i32_0 = arith.constant 0 : i32
    %c0_i32_1 = arith.constant 0 : i32
    return %arg0, %c0_i32, %c0_i32_0 : i32, i32, i32
  }
  func.func @transform_1(%arg0: i32) -> (i32, i32, i32) {
    %c0_i32 = arith.constant 0 : i32
    %c0_i32_0 = arith.constant 0 : i32
    %c0_i32_1 = arith.constant 0 : i32
    return %arg0, %c0_i32, %c0_i32_0 : i32, i32, i32
  }
  func.func @transform_2(%arg0: i32) -> (i32, i32, i32) {
    %c0_i32 = arith.constant 0 : i32
    %c0_i32_0 = arith.constant 0 : i32
    %c0_i32_1 = arith.constant 0 : i32
    return %arg0, %c0_i32, %c0_i32_0 : i32, i32, i32
  }
}

</mosaic_0001>

<llo_original>
// kernel: get_Q_pallas.1
$region0: #{get_Q_pallas.1}
  #allocation0 [shape = 'u32[]', space=smem, size = 0x4, offset = 0x4, fixed_abs, tag = 'smem constant byte address 0x4 - core index']
  #allocation1 [shape = 'u32[144,128]{1,0:T(1,128)}', space=vmem, size = 0x12000, scoped, tag = 'internal scratch']
  %s0 = inlined_call_operand.vmem [shape: f32[16,8,64], index: 0, kind: input, shape index: {}]
  %s1 = inlined_call_operand.vmem [shape: f32[16,8,64], index: 1, kind: input, shape index: {}]
  %s2 = inlined_call_operand.vmem [shape: f32[16,8,8], index: 2, kind: output, shape index: {}]
  %s3 = sld [smem:[#allocation0]]
  $region41: #{get_Q_pallas.1} parent=0
    _
  %s5 = ssub.s32 1, %s3
  %s6 = scalar_select 0, %s5, %s3
  loop: start=0, step=1, limit=4
  $region2: #{get_Q_pallas.1} parent=0 // loop_pre_header
    _
  $region3: #{get_Q_pallas.1} parent=0 // loop_header
    %s8 = sphi 0, %s12
    %p9 = scmp.ge.s32.totalorder %s8, 4
    %s18 = sphi 0, %s20
    %s21 = sphi 0, %s18
    %s22 = sphi 0, %s21
    %s38 = sphi 0, %s22
    %s44 = sphi 0, %s46
    %s47 = sphi 0, %s44
    %s48 = sphi 0, %s47
    %s64 = sphi 0, %s48
    %s70 = sphi 0, %s72
    %s73 = sphi 0, %s70
    %s74 = sphi 0, %s73
    %s90 = sphi 0, %s74
  $region4: #{get_Q_pallas.1} parent=0 // loop_header_branch
    %11 = sbr.rel (%p9) target = $region8
  $region5: #{get_Q_pallas.1} parent=0 // loop_body
    %s13 = ssub.s32 %s8, 1
    %s14 = ssub.s32 %s8, 2
    %s15 = sadd.s32 %s8, 1
    %s16 = ssub.s32 %s8, %s15
    %p17 = scmp.eq.s32.totalorder %s16, 0
    %s19 = sadd.s32 %s18, 1
    %s20 = scalar_select %p17, %s18, %s19
    %p23 = pneg %p17
    %p24 = scmp.eq.s32.totalorder %s8, 1
    %p25 = por %p23, %p24
    %p26 = scmp.ne.s32.totalorder %s18, %s21
    %p27 = scmp.eq.s32.totalorder %s8, 0
    %p28 = por %p26, %p27
    %p29 = scmp.ne.s32.totalorder %s18, %s21
    %p30 = scmp.eq.s32.totalorder %s13, 1
    %p31 = por %p29, %p30
    %p32 = scmp.ne.s32.totalorder %s21, %s22
    %p33 = scmp.eq.s32.totalorder %s13, 0
    %p34 = por %p32, %p33
    %p35 = scmp.ne.s32.totalorder %s21, %s22
    %p36 = scmp.eq.s32.totalorder %s14, 1
    %p37 = por %p35, %p36
    %p39 = scmp.ne.s32.totalorder %s22, %s38
    %p40 = scmp.eq.s32.totalorder %s14, 0
    %p41 = por %p39, %p40
    %s42 = ssub.s32 %s8, %s15
    %p43 = scmp.eq.s32.totalorder %s42, 0
    %s45 = sadd.s32 %s44, 1
    %s46 = scalar_select %p43, %s44, %s45
    %p49 = pneg %p43
    %p50 = scmp.eq.s32.totalorder %s8, 1
    %p51 = por %p49, %p50
    %p52 = scmp.ne.s32.totalorder %s44, %s47
    %p53 = scmp.eq.s32.totalorder %s8, 0
    %p54 = por %p52, %p53
    %p55 = scmp.ne.s32.totalorder %s44, %s47
    %p56 = scmp.eq.s32.totalorder %s13, 1
    %p57 = por %p55, %p56
    %p58 = scmp.ne.s32.totalorder %s47, %s48
    %p59 = scmp.eq.s32.totalorder %s13, 0
    %p60 = por %p58, %p59
    %p61 = scmp.ne.s32.totalorder %s47, %s48
    %p62 = scmp.eq.s32.totalorder %s14, 1
    %p63 = por %p61, %p62
    %p65 = scmp.ne.s32.totalorder %s48, %s64
    %p66 = scmp.eq.s32.totalorder %s14, 0
    %p67 = por %p65, %p66
    %s68 = ssub.s32 %s8, %s15
    %p69 = scmp.eq.s32.totalorder %s68, 0
    %s71 = sadd.s32 %s70, 1
    %s72 = scalar_select %p69, %s70, %s71
    %p75 = pneg %p69
    %p76 = scmp.eq.s32.totalorder %s8, 1
    %p77 = por %p75, %p76
    %p78 = scmp.ne.s32.totalorder %s70, %s73
    %p79 = scmp.eq.s32.totalorder %s8, 0
    %p80 = por %p78, %p79
    %p81 = scmp.ne.s32.totalorder %s70, %s73
    %p82 = scmp.eq.s32.totalorder %s13, 1
    %p83 = por %p81, %p82
    %p84 = scmp.ne.s32.totalorder %s73, %s74
    %p85 = scmp.eq.s32.totalorder %s13, 0
    %p86 = por %p84, %p85
    %p87 = scmp.ne.s32.totalorder %s73, %s74
    %p88 = scmp.eq.s32.totalorder %s14, 1
    %p89 = por %p87, %p88
    %p91 = scmp.ne.s32.totalorder %s74, %s90
    %p92 = scmp.eq.s32.totalorder %s14, 0
    %p93 = por %p91, %p92
    %p94 = scmp.le.s32.totalorder 1, %s8
    %p95 = scmp.lt.s32.totalorder %s8, 3
    %p96 = pnand %p94, %p95
    %p97 = pneg %p96
    // Predicated region
    $region9: #{get_Q_pallas.1} parent=5 // pred_check
      _
    $region10: #{get_Q_pallas.1} parent=5 // pred_check_branch
      %99 = sbr.rel (%p96) target = $region12
    $region11: #{get_Q_pallas.1} parent=5 // pred_region
      %s100 = ssub.s32 %s8, 1
    $region12: #{get_Q_pallas.1} parent=5 // pred_fallthru
      _
    %p101 = scmp.lt.s32.totalorder %s8, 2
    // Predicated region
    $region13: #{get_Q_pallas.1} parent=5 // pred_check
      %p102 = pneg %p101
    $region14: #{get_Q_pallas.1} parent=5 // pred_check_branch
      %104 = sbr.rel (%p102) target = $region16
    $region15: #{get_Q_pallas.1} parent=5 // pred_region
      // Predicated region
      $region17: #{get_Q_pallas.1} parent=15 // pred_check
        %p105 = pneg %p28
      $region18: #{get_Q_pallas.1} parent=15 // pred_check_branch
        %107 = sbr.rel (%p105) target = $region20
      $region19: #{get_Q_pallas.1} parent=15 // pred_region
        %s108 = smul.u32 8, %s8
        %p109 = scmp.lt.s32.totalorder %s108, 15
        %s110 = scalar_select %p109, %s108, 15
        %s111 = smul.addr %s110, 8
        %s112 = scalar_lea.vmem %s0, %s111
        %s113 = smul.u32 8, %s8
      $region20: #{get_Q_pallas.1} parent=15 // pred_fallthru
        _
      // Predicated region
      $region21: #{get_Q_pallas.1} parent=15 // pred_check
        %p114 = pneg %p54
      $region22: #{get_Q_pallas.1} parent=15 // pred_check_branch
        %116 = sbr.rel (%p114) target = $region24
      $region23: #{get_Q_pallas.1} parent=15 // pred_region
        %s117 = smul.u32 8, %s8
        %p118 = scmp.lt.s32.totalorder %s117, 15
        %s119 = scalar_select %p118, %s117, 15
        %s120 = smul.addr %s119, 8
        %s121 = scalar_lea.vmem %s1, %s120
        %s122 = smul.u32 8, %s8
      $region24: #{get_Q_pallas.1} parent=15 // pred_fallthru
        _
    $region16: #{get_Q_pallas.1} parent=5 // pred_fallthru
      _
    %p123 = scmp.le.s32.totalorder 1, %s8
    %p124 = scmp.lt.s32.totalorder %s8, 3
    %p125 = pnand %p123, %p124
    %p126 = pneg %p125
    // Predicated region
    $region25: #{get_Q_pallas.1} parent=5 // pred_check
      _
    $region26: #{get_Q_pallas.1} parent=5 // pred_check_branch
      %128 = sbr.rel (%p125) target = $region28
    $region27: #{get_Q_pallas.1} parent=5 // pred_region
      %s129 = ssub.s32 %s8, 1
      %s130 = smul.u32 8, %s13
      %p131 = scmp.lt.s32.totalorder %s130, 15
      %s132 = scalar_select %p131, %s130, 15
      %s133 = smul.addr %s132, 8
      %s134 = scalar_lea.vmem %s0, %s133
      %p135 = pneg %p34
      %p136 = pneg %p31
      %s137 = smul.u32 8, %s13
      %p138 = scmp.lt.s32.totalorder %s137, 15
      %s139 = scalar_select %p138, %s137, 15
      %s140 = smul.addr %s139, 8
      %s141 = scalar_lea.vmem %s1, %s140
      %p142 = pneg %p60
      %p143 = pneg %p57
      %p144 = pneg %p86
      %p145 = pneg %p83
      %s146 = smul.u32 8, %s13
      %p147 = scmp.lt.s32.totalorder %s146, 15
      %s148 = scalar_select %p147, %s146, 15
      %s149 = smul.addr %s148, 8
      %s150 = scalar_lea.vmem %s2, %s149
      %s151 = smul.u32 8, %s13
      %p152 = scmp.lt.s32.totalorder %s151, 15
      %s153 = scalar_select %p152, %s151, 15
      %s154 = smul.addr %s153, 8
      %s155 = scalar_lea.vmem %s0, %s154
      %s156 = smul.u32 8, %s13
      %s157 = smul.u32 8, %s13
      %p158 = scmp.lt.s32.totalorder %s157, 15
      %s159 = scalar_select %p158, %s157, 15
      %s160 = smul.addr %s159, 8
      %s161 = scalar_lea.vmem %s1, %s160
      %s162 = smul.u32 8, %s13
      %s163 = smul.u32 8, %s13
      %p164 = scmp.lt.s32.totalorder %s163, 15
      %s165 = scalar_select %p164, %s163, 15
      %s166 = smul.addr %s165, 8
      %s167 = scalar_lea.vmem %s2, %s166
      %s168 = smul.u32 8, %s13
      %v169 = vld [vmem:[%s155] sm:$0xff]
      %v170 = vld [vmem:[%s155 + $0x8] sm:$0xff]
      %v171 = vld [vmem:[%s155 + $0x10] sm:$0xff]
      %v172 = vld [vmem:[%s155 + $0x18] sm:$0xff]
      %v173 = vld [vmem:[%s155 + $0x20] sm:$0xff]
      %v174 = vld [vmem:[%s155 + $0x28] sm:$0xff]
      %v175 = vld [vmem:[%s155 + $0x30] sm:$0xff]
      %v176 = vld [vmem:[%s155 + $0x38] sm:$0xff]
      %v177 = vld [vmem:[%s161] sm:$0xff]
      %v178 = vld [vmem:[%s161 + $0x8] sm:$0xff]
      %v179 = vld [vmem:[%s161 + $0x10] sm:$0xff]
      %v180 = vld [vmem:[%s161 + $0x18] sm:$0xff]
      %v181 = vld [vmem:[%s161 + $0x20] sm:$0xff]
      %v182 = vld [vmem:[%s161 + $0x28] sm:$0xff]
      %v183 = vld [vmem:[%s161 + $0x30] sm:$0xff]
      %v184 = vld [vmem:[%s161 + $0x38] sm:$0xff]
      %vm185 = vcmask 523264
      %v187 = vsel %vm185, %v177, 0
      %v190 = vsel %vm185, %v169, 0
      %192 = vmatprep.subr.mxu0 0.0
      %193 = vmatpush1.xpose.msra.mxu0 0.0
      %194 = vmatprep.subr.mxu0 0.0
      %195 = vmatpush1.xpose.msra.mxu0 0.0
      %196 = vmatprep.subr.mxu0 0.0
      %197 = vmatpush1.xpose.msra.mxu0 0.0
      %198 = vmatprep.subr.mxu0 0.0
      %199 = vmatpush1.xpose.msra.mxu0 0.0
      %200 = vmatprep.subr.mxu0 0.0
      %201 = vmatpush1.xpose.msra.mxu0 0.0
      %202 = vmatprep.subr.mxu0 0.0
      %203 = vmatpush1.xpose.msra.mxu0 0.0
      %204 = vmatprep.subr.mxu0 0.0
      %205 = vmatpush1.xpose.msra.mxu0 0.0
      %206 = vmatprep.subr.mxu0 0.0
      %207 = vmatpush1.xpose.msra.mxu0 0.0
      %208 = vmatprep.subr.mxu0 0.0
      %209 = vmatpush1.xpose.msra.mxu0 0.0
      %210 = vmatprep.subr.mxu0 0.0
      %211 = vmatpush1.xpose.msra.mxu0 0.0
      %212 = vmatprep.subr.mxu0 0.0
      %213 = vmatpush1.xpose.msra.mxu0 0.0
      %214 = vmatprep.subr.mxu0 0.0
      %215 = vmatpush1.xpose.msra.mxu0 0.0
      %216 = vmatprep.subr.mxu0 0.0
      %217 = vmatpush1.xpose.msra.mxu0 0.0
      %218 = vmatprep.subr.mxu0 0.0
      %219 = vmatpush1.xpose.msra.mxu0 0.0
      %220 = vmatprep.subr.mxu0 0.0
      %221 = vmatpush1.xpose.msra.mxu0 0.0
      %222 = vmatprep.subr.mxu0 0.0
      %223 = vmatpush1.xpose.msra.mxu0 %v190
      %224 = vmatprep.subr.mxu0 0.0
      %225 = vmatpush2.xpose.msra.mxu0 0.0
      %226 = vmatprep.subr.mxu0 0.0
      %227 = vmatpush2.xpose.msra.mxu0 0.0
      %228 = vmatprep.subr.mxu0 0.0
      %229 = vmatpush2.xpose.msra.mxu0 0.0
      %230 = vmatprep.subr.mxu0 0.0
      %231 = vmatpush2.xpose.msra.mxu0 0.0
      %232 = vmatprep.subr.mxu0 0.0
      %233 = vmatpush2.xpose.msra.mxu0 0.0
      %234 = vmatprep.subr.mxu0 0.0
      %235 = vmatpush2.xpose.msra.mxu0 0.0
      %236 = vmatprep.subr.mxu0 0.0
      %237 = vmatpush2.xpose.msra.mxu0 0.0
      %238 = vmatprep.subr.mxu0 0.0
      %239 = vmatpush2.xpose.msra.mxu0 0.0
      %240 = vmatprep.subr.mxu0 0.0
      %241 = vmatpush2.xpose.msra.mxu0 0.0
      %242 = vmatprep.subr.mxu0 0.0
      %243 = vmatpush2.xpose.msra.mxu0 0.0
      %244 = vmatprep.subr.mxu0 0.0
      %245 = vmatpush2.xpose.msra.mxu0 0.0
      %246 = vmatprep.subr.mxu0 0.0
      %247 = vmatpush2.xpose.msra.mxu0 0.0
      %248 = vmatprep.subr.mxu0 0.0
      %249 = vmatpush2.xpose.msra.mxu0 0.0
      %250 = vmatprep.subr.mxu0 0.0
      %251 = vmatpush2.xpose.msra.mxu0 0.0
      %252 = vmatprep.subr.mxu0 0.0
      %253 = vmatpush2.xpose.msra.mxu0 0.0
      %254 = vmatprep.subr.mxu0 0.0
      %255 = vmatpush2.xpose.msra.mxu0 0.0
      %256 = vmatprep.mubr.f32.mxu0 0.0
      %257 = vmatmul.mubr.f32.gmra.mxu0 %v187
      %v258 = vpop.f32.mrf.mxu0
      %v259 = vadd.f32 0.0, %v258
      %v260 = vpop.f32.mrf.mxu0
      %261 = vdwg.mxu0
      %v263 = vsel %vm185, %v178, 0
      %v266 = vsel %vm185, %v170, 0
      %268 = vmatprep.subr.mxu0 0.0
      %269 = vmatpush1.xpose.msra.mxu0 0.0
      %270 = vmatprep.subr.mxu0 0.0
      %271 = vmatpush1.xpose.msra.mxu0 0.0
      %272 = vmatprep.subr.mxu0 0.0
      %273 = vmatpush1.xpose.msra.mxu0 0.0
      %274 = vmatprep.subr.mxu0 0.0
      %275 = vmatpush1.xpose.msra.mxu0 0.0
      %276 = vmatprep.subr.mxu0 0.0
      %277 = vmatpush1.xpose.msra.mxu0 0.0
      %278 = vmatprep.subr.mxu0 0.0
      %279 = vmatpush1.xpose.msra.mxu0 0.0
      %280 = vmatprep.subr.mxu0 0.0
      %281 = vmatpush1.xpose.msra.mxu0 0.0
      %282 = vmatprep.subr.mxu0 0.0
      %283 = vmatpush1.xpose.msra.mxu0 0.0
      %284 = vmatprep.subr.mxu0 0.0
      %285 = vmatpush1.xpose.msra.mxu0 0.0
      %286 = vmatprep.subr.mxu0 0.0
      %287 = vmatpush1.xpose.msra.mxu0 0.0
      %288 = vmatprep.subr.mxu0 0.0
      %289 = vmatpush1.xpose.msra.mxu0 0.0
      %290 = vmatprep.subr.mxu0 0.0
      %291 = vmatpush1.xpose.msra.mxu0 0.0
      %292 = vmatprep.subr.mxu0 0.0
      %293 = vmatpush1.xpose.msra.mxu0 0.0
      %294 = vmatprep.subr.mxu0 0.0
      %295 = vmatpush1.xpose.msra.mxu0 0.0
      %296 = vmatprep.subr.mxu0 0.0
      %297 = vmatpush1.xpose.msra.mxu0 0.0
      %298 = vmatprep.subr.mxu0 0.0
      %299 = vmatpush1.xpose.msra.mxu0 %v266
      %300 = vmatprep.subr.mxu0 0.0
      %301 = vmatpush2.xpose.msra.mxu0 0.0
      %302 = vmatprep.subr.mxu0 0.0
      %303 = vmatpush2.xpose.msra.mxu0 0.0
      %304 = vmatprep.subr.mxu0 0.0
      %305 = vmatpush2.xpose.msra.mxu0 0.0
      %306 = vmatprep.subr.mxu0 0.0
      %307 = vmatpush2.xpose.msra.mxu0 0.0
      %308 = vmatprep.subr.mxu0 0.0
      %309 = vmatpush2.xpose.msra.mxu0 0.0
      %310 = vmatprep.subr.mxu0 0.0
      %311 = vmatpush2.xpose.msra.mxu0 0.0
      %312 = vmatprep.subr.mxu0 0.0
      %313 = vmatpush2.xpose.msra.mxu0 0.0
      %314 = vmatprep.subr.mxu0 0.0
      %315 = vmatpush2.xpose.msra.mxu0 0.0
      %316 = vmatprep.subr.mxu0 0.0
      %317 = vmatpush2.xpose.msra.mxu0 0.0
      %318 = vmatprep.subr.mxu0 0.0
      %319 = vmatpush2.xpose.msra.mxu0 0.0
      %320 = vmatprep.subr.mxu0 0.0
      %321 = vmatpush2.xpose.msra.mxu0 0.0
      %322 = vmatprep.subr.mxu0 0.0
      %323 = vmatpush2.xpose.msra.mxu0 0.0
      %324 = vmatprep.subr.mxu0 0.0
      %325 = vmatpush2.xpose.msra.mxu0 0.0
      %326 = vmatprep.subr.mxu0 0.0
      %327 = vmatpush2.xpose.msra.mxu0 0.0
      %328 = vmatprep.subr.mxu0 0.0
      %329 = vmatpush2.xpose.msra.mxu0 0.0
      %330 = vmatprep.subr.mxu0 0.0
      %331 = vmatpush2.xpose.msra.mxu0 0.0
      %332 = vmatprep.mubr.f32.mxu0 0.0
      %333 = vmatmul.mubr.f32.gmra.mxu0 %v263
      %v334 = vpop.f32.mrf.mxu0
      %v335 = vadd.f32 0.0, %v334
      %v336 = vpop.f32.mrf.mxu0
      %337 = vdwg.mxu0
      %v339 = vsel %vm185, %v179, 0
      %v342 = vsel %vm185, %v171, 0
      %344 = vmatprep.subr.mxu0 0.0
      %345 = vmatpush1.xpose.msra.mxu0 0.0
      %346 = vmatprep.subr.mxu0 0.0
      %347 = vmatpush1.xpose.msra.mxu0 0.0
      %348 = vmatprep.subr.mxu0 0.0
      %349 = vmatpush1.xpose.msra.mxu0 0.0
      %350 = vmatprep.subr.mxu0 0.0
      %351 = vmatpush1.xpose.msra.mxu0 0.0
      %352 = vmatprep.subr.mxu0 0.0
      %353 = vmatpush1.xpose.msra.mxu0 0.0
      %354 = vmatprep.subr.mxu0 0.0
      %355 = vmatpush1.xpose.msra.mxu0 0.0
      %356 = vmatprep.subr.mxu0 0.0
      %357 = vmatpush1.xpose.msra.mxu0 0.0
      %358 = vmatprep.subr.mxu0 0.0
      %359 = vmatpush1.xpose.msra.mxu0 0.0
      %360 = vmatprep.subr.mxu0 0.0
      %361 = vmatpush1.xpose.msra.mxu0 0.0
      %362 = vmatprep.subr.mxu0 0.0
      %363 = vmatpush1.xpose.msra.mxu0 0.0
      %364 = vmatprep.subr.mxu0 0.0
      %365 = vmatpush1.xpose.msra.mxu0 0.0
      %366 = vmatprep.subr.mxu0 0.0
      %367 = vmatpush1.xpose.msra.mxu0 0.0
      %368 = vmatprep.subr.mxu0 0.0
      %369 = vmatpush1.xpose.msra.mxu0 0.0
      %370 = vmatprep.subr.mxu0 0.0
      %371 = vmatpush1.xpose.msra.mxu0 0.0
      %372 = vmatprep.subr.mxu0 0.0
      %373 = vmatpush1.xpose.msra.mxu0 0.0
      %374 = vmatprep.subr.mxu0 0.0
      %375 = vmatpush1.xpose.msra.mxu0 %v342
      %376 = vmatprep.subr.mxu0 0.0
      %377 = vmatpush2.xpose.msra.mxu0 0.0
      %378 = vmatprep.subr.mxu0 0.0
      %379 = vmatpush2.xpose.msra.mxu0 0.0
      %380 = vmatprep.subr.mxu0 0.0
      %381 = vmatpush2.xpose.msra.mxu0 0.0
      %382 = vmatprep.subr.mxu0 0.0
      %383 = vmatpush2.xpose.msra.mxu0 0.0
      %384 = vmatprep.subr.mxu0 0.0
      %385 = vmatpush2.xpose.msra.mxu0 0.0
      %386 = vmatprep.subr.mxu0 0.0
      %387 = vmatpush2.xpose.msra.mxu0 0.0
      %388 = vmatprep.subr.mxu0 0.0
      %389 = vmatpush2.xpose.msra.mxu0 0.0
      %390 = vmatprep.subr.mxu0 0.0
      %391 = vmatpush2.xpose.msra.mxu0 0.0
      %392 = vmatprep.subr.mxu0 0.0
      %393 = vmatpush2.xpose.msra.mxu0 0.0
      %394 = vmatprep.subr.mxu0 0.0
      %395 = vmatpush2.xpose.msra.mxu0 0.0
      %396 = vmatprep.subr.mxu0 0.0
      %397 = vmatpush2.xpose.msra.mxu0 0.0
      %398 = vmatprep.subr.mxu0 0.0
      %399 = vmatpush2.xpose.msra.mxu0 0.0
      %400 = vmatprep.subr.mxu0 0.0
      %401 = vmatpush2.xpose.msra.mxu0 0.0
      %402 = vmatprep.subr.mxu0 0.0
      %403 = vmatpush2.xpose.msra.mxu0 0.0
      %404 = vmatprep.subr.mxu0 0.0
      %405 = vmatpush2.xpose.msra.mxu0 0.0
      %406 = vmatprep.subr.mxu0 0.0
      %407 = vmatpush2.xpose.msra.mxu0 0.0
      %408 = vmatprep.mubr.f32.mxu0 0.0
      %409 = vmatmul.mubr.f32.gmra.mxu0 %v339
      %v410 = vpop.f32.mrf.mxu0
      %v411 = vadd.f32 0.0, %v410
      %v412 = vpop.f32.mrf.mxu0
      %413 = vdwg.mxu0
      %v415 = vsel %vm185, %v180, 0
      %v418 = vsel %vm185, %v172, 0
      %420 = vmatprep.subr.mxu0 0.0
      %421 = vmatpush1.xpose.msra.mxu0 0.0
      %422 = vmatprep.subr.mxu0 0.0
      %423 = vmatpush1.xpose.msra.mxu0 0.0
      %424 = vmatprep.subr.mxu0 0.0
      %425 = vmatpush1.xpose.msra.mxu0 0.0
      %426 = vmatprep.subr.mxu0 0.0
      %427 = vmatpush1.xpose.msra.mxu0 0.0
      %428 = vmatprep.subr.mxu0 0.0
      %429 = vmatpush1.xpose.msra.mxu0 0.0
      %430 = vmatprep.subr.mxu0 0.0
      %431 = vmatpush1.xpose.msra.mxu0 0.0
      %432 = vmatprep.subr.mxu0 0.0
      %433 = vmatpush1.xpose.msra.mxu0 0.0
      %434 = vmatprep.subr.mxu0 0.0
      %435 = vmatpush1.xpose.msra.mxu0 0.0
      %436 = vmatprep.subr.mxu0 0.0
      %437 = vmatpush1.xpose.msra.mxu0 0.0
      %438 = vmatprep.subr.mxu0 0.0
      %439 = vmatpush1.xpose.msra.mxu0 0.0
      %440 = vmatprep.subr.mxu0 0.0
      %441 = vmatpush1.xpose.msra.mxu0 0.0
      %442 = vmatprep.subr.mxu0 0.0
      %443 = vmatpush1.xpose.msra.mxu0 0.0
      %444 = vmatprep.subr.mxu0 0.0
      %445 = vmatpush1.xpose.msra.mxu0 0.0
      %446 = vmatprep.subr.mxu0 0.0
      %447 = vmatpush1.xpose.msra.mxu0 0.0
      %448 = vmatprep.subr.mxu0 0.0
      %449 = vmatpush1.xpose.msra.mxu0 0.0
      %450 = vmatprep.subr.mxu0 0.0
      %451 = vmatpush1.xpose.msra.mxu0 %v418
      %452 = vmatprep.subr.mxu0 0.0
      %453 = vmatpush2.xpose.msra.mxu0 0.0
      %454 = vmatprep.subr.mxu0 0.0
      %455 = vmatpush2.xpose.msra.mxu0 0.0
      %456 = vmatprep.subr.mxu0 0.0
      %457 = vmatpush2.xpose.msra.mxu0 0.0
      %458 = vmatprep.subr.mxu0 0.0
      %459 = vmatpush2.xpose.msra.mxu0 0.0
      %460 = vmatprep.subr.mxu0 0.0
      %461 = vmatpush2.xpose.msra.mxu0 0.0
      %462 = vmatprep.subr.mxu0 0.0
      %463 = vmatpush2.xpose.msra.mxu0 0.0
      %464 = vmatprep.subr.mxu0 0.0
      %465 = vmatpush2.xpose.msra.mxu0 0.0
      %466 = vmatprep.subr.mxu0 0.0
      %467 = vmatpush2.xpose.msra.mxu0 0.0
      %468 = vmatprep.subr.mxu0 0.0
      %469 = vmatpush2.xpose.msra.mxu0 0.0
      %470 = vmatprep.subr.mxu0 0.0
      %471 = vmatpush2.xpose.msra.mxu0 0.0
      %472 = vmatprep.subr.mxu0 0.0
      %473 = vmatpush2.xpose.msra.mxu0 0.0
      %474 = vmatprep.subr.mxu0 0.0
      %475 = vmatpush2.xpose.msra.mxu0 0.0
      %476 = vmatprep.subr.mxu0 0.0
      %477 = vmatpush2.xpose.msra.mxu0 0.0
      %478 = vmatprep.subr.mxu0 0.0
      %479 = vmatpush2.xpose.msra.mxu0 0.0
      %480 = vmatprep.subr.mxu0 0.0
      %481 = vmatpush2.xpose.msra.mxu0 0.0
      %482 = vmatprep.subr.mxu0 0.0
      %483 = vmatpush2.xpose.msra.mxu0 0.0
      %484 = vmatprep.mubr.f32.mxu0 0.0
      %485 = vmatmul.mubr.f32.gmra.mxu0 %v415
      %v486 = vpop.f32.mrf.mxu0
      %v487 = vadd.f32 0.0, %v486
      %v488 = vpop.f32.mrf.mxu0
      %489 = vdwg.mxu0
      %v491 = vsel %vm185, %v181, 0
      %v494 = vsel %vm185, %v173, 0
      %496 = vmatprep.subr.mxu0 0.0
      %497 = vmatpush1.xpose.msra.mxu0 0.0
      %498 = vmatprep.subr.mxu0 0.0
      %499 = vmatpush1.xpose.msra.mxu0 0.0
      %500 = vmatprep.subr.mxu0 0.0
      %501 = vmatpush1.xpose.msra.mxu0 0.0
      %502 = vmatprep.subr.mxu0 0.0
      %503 = vmatpush1.xpose.msra.mxu0 0.0
      %504 = vmatprep.subr.mxu0 0.0
      %505 = vmatpush1.xpose.msra.mxu0 0.0
      %506 = vmatprep.subr.mxu0 0.0
      %507 = vmatpush1.xpose.msra.mxu0 0.0
      %508 = vmatprep.subr.mxu0 0.0
      %509 = vmatpush1.xpose.msra.mxu0 0.0
      %510 = vmatprep.subr.mxu0 0.0
      %511 = vmatpush1.xpose.msra.mxu0 0.0
      %512 = vmatprep.subr.mxu0 0.0
      %513 = vmatpush1.xpose.msra.mxu0 0.0
      %514 = vmatprep.subr.mxu0 0.0
      %515 = vmatpush1.xpose.msra.mxu0 0.0
      %516 = vmatprep.subr.mxu0 0.0
      %517 = vmatpush1.xpose.msra.mxu0 0.0
      %518 = vmatprep.subr.mxu0 0.0
      %519 = vmatpush1.xpose.msra.mxu0 0.0
      %520 = vmatprep.subr.mxu0 0.0
      %521 = vmatpush1.xpose.msra.mxu0 0.0
      %522 = vmatprep.subr.mxu0 0.0
      %523 = vmatpush1.xpose.msra.mxu0 0.0
      %524 = vmatprep.subr.mxu0 0.0
      %525 = vmatpush1.xpose.msra.mxu0 0.0
      %526 = vmatprep.subr.mxu0 0.0
      %527 = vmatpush1.xpose.msra.mxu0 %v494
      %528 = vmatprep.subr.mxu0 0.0
      %529 = vmatpush2.xpose.msra.mxu0 0.0
      %530 = vmatprep.subr.mxu0 0.0
      %531 = vmatpush2.xpose.msra.mxu0 0.0
      %532 = vmatprep.subr.mxu0 0.0
      %533 = vmatpush2.xpose.msra.mxu0 0.0
      %534 = vmatprep.subr.mxu0 0.0
      %535 = vmatpush2.xpose.msra.mxu0 0.0
      %536 = vmatprep.subr.mxu0 0.0
      %537 = vmatpush2.xpose.msra.mxu0 0.0
      %538 = vmatprep.subr.mxu0 0.0
      %539 = vmatpush2.xpose.msra.mxu0 0.0
      %540 = vmatprep.subr.mxu0 0.0
      %541 = vmatpush2.xpose.msra.mxu0 0.0
      %542 = vmatprep.subr.mxu0 0.0
      %543 = vmatpush2.xpose.msra.mxu0 0.0
      %544 = vmatprep.subr.mxu0 0.0
      %545 = vmatpush2.xpose.msra.mxu0 0.0
      %546 = vmatprep.subr.mxu0 0.0
      %547 = vmatpush2.xpose.msra.mxu0 0.0
      %548 = vmatprep.subr.mxu0 0.0
      %549 = vmatpush2.xpose.msra.mxu0 0.0
      %550 = vmatprep.subr.mxu0 0.0
      %551 = vmatpush2.xpose.msra.mxu0 0.0
      %552 = vmatprep.subr.mxu0 0.0
      %553 = vmatpush2.xpose.msra.mxu0 0.0
      %554 = vmatprep.subr.mxu0 0.0
      %555 = vmatpush2.xpose.msra.mxu0 0.0
      %556 = vmatprep.subr.mxu0 0.0
      %557 = vmatpush2.xpose.msra.mxu0 0.0
      %558 = vmatprep.subr.mxu0 0.0
      %559 = vmatpush2.xpose.msra.mxu0 0.0
      %560 = vmatprep.mubr.f32.mxu0 0.0
      %561 = vmatmul.mubr.f32.gmra.mxu0 %v491
      %v562 = vpop.f32.mrf.mxu0
      %v563 = vadd.f32 0.0, %v562
      %v564 = vpop.f32.mrf.mxu0
      %565 = vdwg.mxu0
      %v567 = vsel %vm185, %v182, 0
      %v570 = vsel %vm185, %v174, 0
      %572 = vmatprep.subr.mxu0 0.0
      %573 = vmatpush1.xpose.msra.mxu0 0.0
      %574 = vmatprep.subr.mxu0 0.0
      %575 = vmatpush1.xpose.msra.mxu0 0.0
      %576 = vmatprep.subr.mxu0 0.0
      %577 = vmatpush1.xpose.msra.mxu0 0.0
      %578 = vmatprep.subr.mxu0 0.0
      %579 = vmatpush1.xpose.msra.mxu0 0.0
      %580 = vmatprep.subr.mxu0 0.0
      %581 = vmatpush1.xpose.msra.mxu0 0.0
      %582 = vmatprep.subr.mxu0 0.0
      %583 = vmatpush1.xpose.msra.mxu0 0.0
      %584 = vmatprep.subr.mxu0 0.0
      %585 = vmatpush1.xpose.msra.mxu0 0.0
      %586 = vmatprep.subr.mxu0 0.0
      %587 = vmatpush1.xpose.msra.mxu0 0.0
      %588 = vmatprep.subr.mxu0 0.0
      %589 = vmatpush1.xpose.msra.mxu0 0.0
      %590 = vmatprep.subr.mxu0 0.0
      %591 = vmatpush1.xpose.msra.mxu0 0.0
      %592 = vmatprep.subr.mxu0 0.0
      %593 = vmatpush1.xpose.msra.mxu0 0.0
      %594 = vmatprep.subr.mxu0 0.0
      %595 = vmatpush1.xpose.msra.mxu0 0.0
      %596 = vmatprep.subr.mxu0 0.0
      %597 = vmatpush1.xpose.msra.mxu0 0.0
      %598 = vmatprep.subr.mxu0 0.0
      %599 = vmatpush1.xpose.msra.mxu0 0.0
      %600 = vmatprep.subr.mxu0 0.0
      %601 = vmatpush1.xpose.msra.mxu0 0.0
      %602 = vmatprep.subr.mxu0 0.0
      %603 = vmatpush1.xpose.msra.mxu0 %v570
      %604 = vmatprep.subr.mxu0 0.0
      %605 = vmatpush2.xpose.msra.mxu0 0.0
      %606 = vmatprep.subr.mxu0 0.0
      %607 = vmatpush2.xpose.msra.mxu0 0.0
      %608 = vmatprep.subr.mxu0 0.0
      %609 = vmatpush2.xpose.msra.mxu0 0.0
      %610 = vmatprep.subr.mxu0 0.0
      %611 = vmatpush2.xpose.msra.mxu0 0.0
      %612 = vmatprep.subr.mxu0 0.0
      %613 = vmatpush2.xpose.msra.mxu0 0.0
      %614 = vmatprep.subr.mxu0 0.0
      %615 = vmatpush2.xpose.msra.mxu0 0.0
      %616 = vmatprep.subr.mxu0 0.0
      %617 = vmatpush2.xpose.msra.mxu0 0.0
      %618 = vmatprep.subr.mxu0 0.0
      %619 = vmatpush2.xpose.msra.mxu0 0.0
      %620 = vmatprep.subr.mxu0 0.0
      %621 = vmatpush2.xpose.msra.mxu0 0.0
      %622 = vmatprep.subr.mxu0 0.0
      %623 = vmatpush2.xpose.msra.mxu0 0.0
      %624 = vmatprep.subr.mxu0 0.0
      %625 = vmatpush2.xpose.msra.mxu0 0.0
      %626 = vmatprep.subr.mxu0 0.0
      %627 = vmatpush2.xpose.msra.mxu0 0.0
      %628 = vmatprep.subr.mxu0 0.0
      %629 = vmatpush2.xpose.msra.mxu0 0.0
      %630 = vmatprep.subr.mxu0 0.0
      %631 = vmatpush2.xpose.msra.mxu0 0.0
      %632 = vmatprep.subr.mxu0 0.0
      %633 = vmatpush2.xpose.msra.mxu0 0.0
      %634 = vmatprep.subr.mxu0 0.0
      %635 = vmatpush2.xpose.msra.mxu0 0.0
      %636 = vmatprep.mubr.f32.mxu0 0.0
      %637 = vmatmul.mubr.f32.gmra.mxu0 %v567
      %v638 = vpop.f32.mrf.mxu0
      %v639 = vadd.f32 0.0, %v638
      %v640 = vpop.f32.mrf.mxu0
      %641 = vdwg.mxu0
      %v643 = vsel %vm185, %v183, 0
      %v646 = vsel %vm185, %v175, 0
      %648 = vmatprep.subr.mxu0 0.0
      %649 = vmatpush1.xpose.msra.mxu0 0.0
      %650 = vmatprep.subr.mxu0 0.0
      %651 = vmatpush1.xpose.msra.mxu0 0.0
      %652 = vmatprep.subr.mxu0 0.0
      %653 = vmatpush1.xpose.msra.mxu0 0.0
      %654 = vmatprep.subr.mxu0 0.0
      %655 = vmatpush1.xpose.msra.mxu0 0.0
      %656 = vmatprep.subr.mxu0 0.0
      %657 = vmatpush1.xpose.msra.mxu0 0.0
      %658 = vmatprep.subr.mxu0 0.0
      %659 = vmatpush1.xpose.msra.mxu0 0.0
      %660 = vmatprep.subr.mxu0 0.0
      %661 = vmatpush1.xpose.msra.mxu0 0.0
      %662 = vmatprep.subr.mxu0 0.0
      %663 = vmatpush1.xpose.msra.mxu0 0.0
      %664 = vmatprep.subr.mxu0 0.0
      %665 = vmatpush1.xpose.msra.mxu0 0.0
      %666 = vmatprep.subr.mxu0 0.0
      %667 = vmatpush1.xpose.msra.mxu0 0.0
      %668 = vmatprep.subr.mxu0 0.0
      %669 = vmatpush1.xpose.msra.mxu0 0.0
      %670 = vmatprep.subr.mxu0 0.0
      %671 = vmatpush1.xpose.msra.mxu0 0.0
      %672 = vmatprep.subr.mxu0 0.0
      %673 = vmatpush1.xpose.msra.mxu0 0.0
      %674 = vmatprep.subr.mxu0 0.0
      %675 = vmatpush1.xpose.msra.mxu0 0.0
      %676 = vmatprep.subr.mxu0 0.0
      %677 = vmatpush1.xpose.msra.mxu0 0.0
      %678 = vmatprep.subr.mxu0 0.0
      %679 = vmatpush1.xpose.msra.mxu0 %v646
      %680 = vmatprep.subr.mxu0 0.0
      %681 = vmatpush2.xpose.msra.mxu0 0.0
      %682 = vmatprep.subr.mxu0 0.0
      %683 = vmatpush2.xpose.msra.mxu0 0.0
      %684 = vmatprep.subr.mxu0 0.0
      %685 = vmatpush2.xpose.msra.mxu0 0.0
      %686 = vmatprep.subr.mxu0 0.0
      %687 = vmatpush2.xpose.msra.mxu0 0.0
      %688 = vmatprep.subr.mxu0 0.0
      %689 = vmatpush2.xpose.msra.mxu0 0.0
      %690 = vmatprep.subr.mxu0 0.0
      %691 = vmatpush2.xpose.msra.mxu0 0.0
      %692 = vmatprep.subr.mxu0 0.0
      %693 = vmatpush2.xpose.msra.mxu0 0.0
      %694 = vmatprep.subr.mxu0 0.0
      %695 = vmatpush2.xpose.msra.mxu0 0.0
      %696 = vmatprep.subr.mxu0 0.0
      %697 = vmatpush2.xpose.msra.mxu0 0.0
      %698 = vmatprep.subr.mxu0 0.0
      %699 = vmatpush2.xpose.msra.mxu0 0.0
      %700 = vmatprep.subr.mxu0 0.0
      %701 = vmatpush2.xpose.msra.mxu0 0.0
      %702 = vmatprep.subr.mxu0 0.0
      %703 = vmatpush2.xpose.msra.mxu0 0.0
      %704 = vmatprep.subr.mxu0 0.0
      %705 = vmatpush2.xpose.msra.mxu0 0.0
      %706 = vmatprep.subr.mxu0 0.0
      %707 = vmatpush2.xpose.msra.mxu0 0.0
      %708 = vmatprep.subr.mxu0 0.0
      %709 = vmatpush2.xpose.msra.mxu0 0.0
      %710 = vmatprep.subr.mxu0 0.0
      %711 = vmatpush2.xpose.msra.mxu0 0.0
      %712 = vmatprep.mubr.f32.mxu0 0.0
      %713 = vmatmul.mubr.f32.gmra.mxu0 %v643
      %v714 = vpop.f32.mrf.mxu0
      %v715 = vadd.f32 0.0, %v714
      %v716 = vpop.f32.mrf.mxu0
      %717 = vdwg.mxu0
      %v719 = vsel %vm185, %v184, 0
      %v722 = vsel %vm185, %v176, 0
      %724 = vmatprep.subr.mxu0 0.0
      %725 = vmatpush1.xpose.msra.mxu0 0.0
      %726 = vmatprep.subr.mxu0 0.0
      %727 = vmatpush1.xpose.msra.mxu0 0.0
      %728 = vmatprep.subr.mxu0 0.0
      %729 = vmatpush1.xpose.msra.mxu0 0.0
      %730 = vmatprep.subr.mxu0 0.0
      %731 = vmatpush1.xpose.msra.mxu0 0.0
      %732 = vmatprep.subr.mxu0 0.0
      %733 = vmatpush1.xpose.msra.mxu0 0.0
      %734 = vmatprep.subr.mxu0 0.0
      %735 = vmatpush1.xpose.msra.mxu0 0.0
      %736 = vmatprep.subr.mxu0 0.0
      %737 = vmatpush1.xpose.msra.mxu0 0.0
      %738 = vmatprep.subr.mxu0 0.0
      %739 = vmatpush1.xpose.msra.mxu0 0.0
      %740 = vmatprep.subr.mxu0 0.0
      %741 = vmatpush1.xpose.msra.mxu0 0.0
      %742 = vmatprep.subr.mxu0 0.0
      %743 = vmatpush1.xpose.msra.mxu0 0.0
      %744 = vmatprep.subr.mxu0 0.0
      %745 = vmatpush1.xpose.msra.mxu0 0.0
      %746 = vmatprep.subr.mxu0 0.0
      %747 = vmatpush1.xpose.msra.mxu0 0.0
      %748 = vmatprep.subr.mxu0 0.0
      %749 = vmatpush1.xpose.msra.mxu0 0.0
      %750 = vmatprep.subr.mxu0 0.0
      %751 = vmatpush1.xpose.msra.mxu0 0.0
      %752 = vmatprep.subr.mxu0 0.0
      %753 = vmatpush1.xpose.msra.mxu0 0.0
      %754 = vmatprep.subr.mxu0 0.0
      %755 = vmatpush1.xpose.msra.mxu0 %v722
      %756 = vmatprep.subr.mxu0 0.0
      %757 = vmatpush2.xpose.msra.mxu0 0.0
      %758 = vmatprep.subr.mxu0 0.0
      %759 = vmatpush2.xpose.msra.mxu0 0.0
      %760 = vmatprep.subr.mxu0 0.0
      %761 = vmatpush2.xpose.msra.mxu0 0.0
      %762 = vmatprep.subr.mxu0 0.0
      %763 = vmatpush2.xpose.msra.mxu0 0.0
      %764 = vmatprep.subr.mxu0 0.0
      %765 = vmatpush2.xpose.msra.mxu0 0.0
      %766 = vmatprep.subr.mxu0 0.0
      %767 = vmatpush2.xpose.msra.mxu0 0.0
      %768 = vmatprep.subr.mxu0 0.0
      %769 = vmatpush2.xpose.msra.mxu0 0.0
      %770 = vmatprep.subr.mxu0 0.0
      %771 = vmatpush2.xpose.msra.mxu0 0.0
      %772 = vmatprep.subr.mxu0 0.0
      %773 = vmatpush2.xpose.msra.mxu0 0.0
      %774 = vmatprep.subr.mxu0 0.0
      %775 = vmatpush2.xpose.msra.mxu0 0.0
      %776 = vmatprep.subr.mxu0 0.0
      %777 = vmatpush2.xpose.msra.mxu0 0.0
      %778 = vmatprep.subr.mxu0 0.0
      %779 = vmatpush2.xpose.msra.mxu0 0.0
      %780 = vmatprep.subr.mxu0 0.0
      %781 = vmatpush2.xpose.msra.mxu0 0.0
      %782 = vmatprep.subr.mxu0 0.0
      %783 = vmatpush2.xpose.msra.mxu0 0.0
      %784 = vmatprep.subr.mxu0 0.0
      %785 = vmatpush2.xpose.msra.mxu0 0.0
      %786 = vmatprep.subr.mxu0 0.0
      %787 = vmatpush2.xpose.msra.mxu0 0.0
      %788 = vmatprep.mubr.f32.mxu0 0.0
      %789 = vmatmul.mubr.f32.gmra.mxu0 %v719
      %v790 = vpop.f32.mrf.mxu0
      %v791 = vadd.f32 0.0, %v790
      %v792 = vpop.f32.mrf.mxu0
      %793 = vdwg.mxu0
      %v794 = vmul.f32 %v169, %v169
      %v795 = vmul.f32 %v170, %v170
      %v796 = vmul.f32 %v171, %v171
      %v797 = vmul.f32 %v172, %v172
      %v798 = vmul.f32 %v173, %v173
      %v799 = vmul.f32 %v174, %v174
      %v800 = vmul.f32 %v175, %v175
      %v801 = vmul.f32 %v176, %v176
      %v802 = vsel %vm185, %v794, 0.0
      %803 = vadd.xlane.f32.xlu0 %v802
      %v804 = vpop.xlane.xlu0 %803
      %v805 = vsel %vm185, %v795, 0.0
      %806 = vadd.xlane.f32.xlu0 %v805
      %v807 = vpop.xlane.xlu0 %806
      %v808 = vsel %vm185, %v796, 0.0
      %809 = vadd.xlane.f32.xlu0 %v808
      %v810 = vpop.xlane.xlu0 %809
      %v811 = vsel %vm185, %v797, 0.0
      %812 = vadd.xlane.f32.xlu0 %v811
      %v813 = vpop.xlane.xlu0 %812
      %v814 = vsel %vm185, %v798, 0.0
      %815 = vadd.xlane.f32.xlu0 %v814
      %v816 = vpop.xlane.xlu0 %815
      %v817 = vsel %vm185, %v799, 0.0
      %818 = vadd.xlane.f32.xlu0 %v817
      %v819 = vpop.xlane.xlu0 %818
      %v820 = vsel %vm185, %v800, 0.0
      %821 = vadd.xlane.f32.xlu0 %v820
      %v822 = vpop.xlane.xlu0 %821
      %v823 = vsel %vm185, %v801, 0.0
      %824 = vadd.xlane.f32.xlu0 %v823
      %v825 = vpop.xlane.xlu0 %824
      %v826 = vmul.f32 %v177, %v177
      %v827 = vmul.f32 %v178, %v178
      %v828 = vmul.f32 %v179, %v179
      %v829 = vmul.f32 %v180, %v180
      %v830 = vmul.f32 %v181, %v181
      %v831 = vmul.f32 %v182, %v182
      %v832 = vmul.f32 %v183, %v183
      %v833 = vmul.f32 %v184, %v184
      %v834 = vsel %vm185, %v826, 0.0
      %835 = vadd.xlane.f32.xlu0 %v834
      %v836 = vpop.xlane.xlu0 %835
      %v837 = vsel %vm185, %v827, 0.0
      %838 = vadd.xlane.f32.xlu0 %v837
      %v839 = vpop.xlane.xlu0 %838
      %v840 = vsel %vm185, %v828, 0.0
      %841 = vadd.xlane.f32.xlu0 %v840
      %v842 = vpop.xlane.xlu0 %841
      %v843 = vsel %vm185, %v829, 0.0
      %844 = vadd.xlane.f32.xlu0 %v843
      %v845 = vpop.xlane.xlu0 %844
      %v846 = vsel %vm185, %v830, 0.0
      %847 = vadd.xlane.f32.xlu0 %v846
      %v848 = vpop.xlane.xlu0 %847
      %v849 = vsel %vm185, %v831, 0.0
      %850 = vadd.xlane.f32.xlu0 %v849
      %v851 = vpop.xlane.xlu0 %850
      %v852 = vsel %vm185, %v832, 0.0
      %853 = vadd.xlane.f32.xlu0 %v852
      %v854 = vpop.xlane.xlu0 %853
      %v855 = vsel %vm185, %v833, 0.0
      %856 = vadd.xlane.f32.xlu0 %v855
      %v857 = vpop.xlane.xlu0 %856
      %v866 = vlaneseq
      %v867 = vshrl.u32 %v866, 7
      %v868 = vsub.s32 0, %v867
      %v869 = vrot.slane %v836, %v868
      %v870 = vlaneseq
      %v871 = vshrl.u32 %v870, 7
      %v872 = vsub.s32 1, %v871
      %v873 = vrot.slane %v836, %v872
      %v874 = vlaneseq
      %v875 = vshrl.u32 %v874, 7
      %v876 = vsub.s32 2, %v875
      %v877 = vrot.slane %v836, %v876
      %v878 = vlaneseq
      %v879 = vshrl.u32 %v878, 7
      %v880 = vsub.s32 3, %v879
      %v881 = vrot.slane %v836, %v880
      %v882 = vlaneseq
      %v883 = vshrl.u32 %v882, 7
      %v884 = vsub.s32 4, %v883
      %v885 = vrot.slane %v836, %v884
      %v886 = vlaneseq
      %v887 = vshrl.u32 %v886, 7
      %v888 = vsub.s32 5, %v887
      %v889 = vrot.slane %v836, %v888
      %v890 = vlaneseq
      %v891 = vshrl.u32 %v890, 7
      %v892 = vsub.s32 6, %v891
      %v893 = vrot.slane %v836, %v892
      %v894 = vlaneseq
      %v895 = vshrl.u32 %v894, 7
      %v896 = vsub.s32 7, %v895
      %v897 = vrot.slane %v836, %v896
      %v898 = vlaneseq
      %v899 = vshrl.u32 %v898, 7
      %v900 = vsub.s32 0, %v899
      %v901 = vrot.slane %v839, %v900
      %v902 = vlaneseq
      %v903 = vshrl.u32 %v902, 7
      %v904 = vsub.s32 1, %v903
      %v905 = vrot.slane %v839, %v904
      %v906 = vlaneseq
      %v907 = vshrl.u32 %v906, 7
      %v908 = vsub.s32 2, %v907
      %v909 = vrot.slane %v839, %v908
      %v910 = vlaneseq
      %v911 = vshrl.u32 %v910, 7
      %v912 = vsub.s32 3, %v911
      %v913 = vrot.slane %v839, %v912
      %v914 = vlaneseq
      %v915 = vshrl.u32 %v914, 7
      %v916 = vsub.s32 4, %v915
      %v917 = vrot.slane %v839, %v916
      %v918 = vlaneseq
      %v919 = vshrl.u32 %v918, 7
      %v920 = vsub.s32 5, %v919
      %v921 = vrot.slane %v839, %v920
      %v922 = vlaneseq
      %v923 = vshrl.u32 %v922, 7
      %v924 = vsub.s32 6, %v923
      %v925 = vrot.slane %v839, %v924
      %v926 = vlaneseq
      %v927 = vshrl.u32 %v926, 7
      %v928 = vsub.s32 7, %v927
      %v929 = vrot.slane %v839, %v928
      %v930 = vlaneseq
      %v931 = vshrl.u32 %v930, 7
      %v932 = vsub.s32 0, %v931
      %v933 = vrot.slane %v842, %v932
      %v934 = vlaneseq
      %v935 = vshrl.u32 %v934, 7
      %v936 = vsub.s32 1, %v935
      %v937 = vrot.slane %v842, %v936
      %v938 = vlaneseq
      %v939 = vshrl.u32 %v938, 7
      %v940 = vsub.s32 2, %v939
      %v941 = vrot.slane %v842, %v940
      %v942 = vlaneseq
      %v943 = vshrl.u32 %v942, 7
      %v944 = vsub.s32 3, %v943
      %v945 = vrot.slane %v842, %v944
      %v946 = vlaneseq
      %v947 = vshrl.u32 %v946, 7
      %v948 = vsub.s32 4, %v947
      %v949 = vrot.slane %v842, %v948
      %v950 = vlaneseq
      %v951 = vshrl.u32 %v950, 7
      %v952 = vsub.s32 5, %v951
      %v953 = vrot.slane %v842, %v952
      %v954 = vlaneseq
      %v955 = vshrl.u32 %v954, 7
      %v956 = vsub.s32 6, %v955
      %v957 = vrot.slane %v842, %v956
      %v958 = vlaneseq
      %v959 = vshrl.u32 %v958, 7
      %v960 = vsub.s32 7, %v959
      %v961 = vrot.slane %v842, %v960
      %v962 = vlaneseq
      %v963 = vshrl.u32 %v962, 7
      %v964 = vsub.s32 0, %v963
      %v965 = vrot.slane %v845, %v964
      %v966 = vlaneseq
      %v967 = vshrl.u32 %v966, 7
      %v968 = vsub.s32 1, %v967
      %v969 = vrot.slane %v845, %v968
      %v970 = vlaneseq
      %v971 = vshrl.u32 %v970, 7
      %v972 = vsub.s32 2, %v971
      %v973 = vrot.slane %v845, %v972
      %v974 = vlaneseq
      %v975 = vshrl.u32 %v974, 7
      %v976 = vsub.s32 3, %v975
      %v977 = vrot.slane %v845, %v976
      %v978 = vlaneseq
      %v979 = vshrl.u32 %v978, 7
      %v980 = vsub.s32 4, %v979
      %v981 = vrot.slane %v845, %v980
      %v982 = vlaneseq
      %v983 = vshrl.u32 %v982, 7
      %v984 = vsub.s32 5, %v983
      %v985 = vrot.slane %v845, %v984
      %v986 = vlaneseq
      %v987 = vshrl.u32 %v986, 7
      %v988 = vsub.s32 6, %v987
      %v989 = vrot.slane %v845, %v988
      %v990 = vlaneseq
      %v991 = vshrl.u32 %v990, 7
      %v992 = vsub.s32 7, %v991
      %v993 = vrot.slane %v845, %v992
      %v994 = vlaneseq
      %v995 = vshrl.u32 %v994, 7
      %v996 = vsub.s32 0, %v995
      %v997 = vrot.slane %v848, %v996
      %v998 = vlaneseq
      %v999 = vshrl.u32 %v998, 7
      %v1000 = vsub.s32 1, %v999
      %v1001 = vrot.slane %v848, %v1000
      %v1002 = vlaneseq
      %v1003 = vshrl.u32 %v1002, 7
      %v1004 = vsub.s32 2, %v1003
      %v1005 = vrot.slane %v848, %v1004
      %v1006 = vlaneseq
      %v1007 = vshrl.u32 %v1006, 7
      %v1008 = vsub.s32 3, %v1007
      %v1009 = vrot.slane %v848, %v1008
      %v1010 = vlaneseq
      %v1011 = vshrl.u32 %v1010, 7
      %v1012 = vsub.s32 4, %v1011
      %v1013 = vrot.slane %v848, %v1012
      %v1014 = vlaneseq
      %v1015 = vshrl.u32 %v1014, 7
      %v1016 = vsub.s32 5, %v1015
      %v1017 = vrot.slane %v848, %v1016
      %v1018 = vlaneseq
      %v1019 = vshrl.u32 %v1018, 7
      %v1020 = vsub.s32 6, %v1019
      %v1021 = vrot.slane %v848, %v1020
      %v1022 = vlaneseq
      %v1023 = vshrl.u32 %v1022, 7
      %v1024 = vsub.s32 7, %v1023
      %v1025 = vrot.slane %v848, %v1024
      %v1026 = vlaneseq
      %v1027 = vshrl.u32 %v1026, 7
      %v1028 = vsub.s32 0, %v1027
      %v1029 = vrot.slane %v851, %v1028
      %v1030 = vlaneseq
      %v1031 = vshrl.u32 %v1030, 7
      %v1032 = vsub.s32 1, %v1031
      %v1033 = vrot.slane %v851, %v1032
      %v1034 = vlaneseq
      %v1035 = vshrl.u32 %v1034, 7
      %v1036 = vsub.s32 2, %v1035
      %v1037 = vrot.slane %v851, %v1036
      %v1038 = vlaneseq
      %v1039 = vshrl.u32 %v1038, 7
      %v1040 = vsub.s32 3, %v1039
      %v1041 = vrot.slane %v851, %v1040
      %v1042 = vlaneseq
      %v1043 = vshrl.u32 %v1042, 7
      %v1044 = vsub.s32 4, %v1043
      %v1045 = vrot.slane %v851, %v1044
      %v1046 = vlaneseq
      %v1047 = vshrl.u32 %v1046, 7
      %v1048 = vsub.s32 5, %v1047
      %v1049 = vrot.slane %v851, %v1048
      %v1050 = vlaneseq
      %v1051 = vshrl.u32 %v1050, 7
      %v1052 = vsub.s32 6, %v1051
      %v1053 = vrot.slane %v851, %v1052
      %v1054 = vlaneseq
      %v1055 = vshrl.u32 %v1054, 7
      %v1056 = vsub.s32 7, %v1055
      %v1057 = vrot.slane %v851, %v1056
      %v1058 = vlaneseq
      %v1059 = vshrl.u32 %v1058, 7
      %v1060 = vsub.s32 0, %v1059
      %v1061 = vrot.slane %v854, %v1060
      %v1062 = vlaneseq
      %v1063 = vshrl.u32 %v1062, 7
      %v1064 = vsub.s32 1, %v1063
      %v1065 = vrot.slane %v854, %v1064
      %v1066 = vlaneseq
      %v1067 = vshrl.u32 %v1066, 7
      %v1068 = vsub.s32 2, %v1067
      %v1069 = vrot.slane %v854, %v1068
      %v1070 = vlaneseq
      %v1071 = vshrl.u32 %v1070, 7
      %v1072 = vsub.s32 3, %v1071
      %v1073 = vrot.slane %v854, %v1072
      %v1074 = vlaneseq
      %v1075 = vshrl.u32 %v1074, 7
      %v1076 = vsub.s32 4, %v1075
      %v1077 = vrot.slane %v854, %v1076
      %v1078 = vlaneseq
      %v1079 = vshrl.u32 %v1078, 7
      %v1080 = vsub.s32 5, %v1079
      %v1081 = vrot.slane %v854, %v1080
      %v1082 = vlaneseq
      %v1083 = vshrl.u32 %v1082, 7
      %v1084 = vsub.s32 6, %v1083
      %v1085 = vrot.slane %v854, %v1084
      %v1086 = vlaneseq
      %v1087 = vshrl.u32 %v1086, 7
      %v1088 = vsub.s32 7, %v1087
      %v1089 = vrot.slane %v854, %v1088
      %v1090 = vlaneseq
      %v1091 = vshrl.u32 %v1090, 7
      %v1092 = vsub.s32 0, %v1091
      %v1093 = vrot.slane %v857, %v1092
      %v1094 = vlaneseq
      %v1095 = vshrl.u32 %v1094, 7
      %v1096 = vsub.s32 1, %v1095
      %v1097 = vrot.slane %v857, %v1096
      %v1098 = vlaneseq
      %v1099 = vshrl.u32 %v1098, 7
      %v1100 = vsub.s32 2, %v1099
      %v1101 = vrot.slane %v857, %v1100
      %v1102 = vlaneseq
      %v1103 = vshrl.u32 %v1102, 7
      %v1104 = vsub.s32 3, %v1103
      %v1105 = vrot.slane %v857, %v1104
      %v1106 = vlaneseq
      %v1107 = vshrl.u32 %v1106, 7
      %v1108 = vsub.s32 4, %v1107
      %v1109 = vrot.slane %v857, %v1108
      %v1110 = vlaneseq
      %v1111 = vshrl.u32 %v1110, 7
      %v1112 = vsub.s32 5, %v1111
      %v1113 = vrot.slane %v857, %v1112
      %v1114 = vlaneseq
      %v1115 = vshrl.u32 %v1114, 7
      %v1116 = vsub.s32 6, %v1115
      %v1117 = vrot.slane %v857, %v1116
      %v1118 = vlaneseq
      %v1119 = vshrl.u32 %v1118, 7
      %v1120 = vsub.s32 7, %v1119
      %v1121 = vrot.slane %v857, %v1120
      %v1186 = vadd.f32 %v804, %v869
      %v1187 = vadd.f32 %v804, %v873
      %v1188 = vadd.f32 %v804, %v877
      %v1189 = vadd.f32 %v804, %v881
      %v1190 = vadd.f32 %v804, %v885
      %v1191 = vadd.f32 %v804, %v889
      %v1192 = vadd.f32 %v804, %v893
      %v1193 = vadd.f32 %v804, %v897
      %v1194 = vadd.f32 %v807, %v901
      %v1195 = vadd.f32 %v807, %v905
      %v1196 = vadd.f32 %v807, %v909
      %v1197 = vadd.f32 %v807, %v913
      %v1198 = vadd.f32 %v807, %v917
      %v1199 = vadd.f32 %v807, %v921
      %v1200 = vadd.f32 %v807, %v925
      %v1201 = vadd.f32 %v807, %v929
      %v1202 = vadd.f32 %v810, %v933
      %v1203 = vadd.f32 %v810, %v937
      %v1204 = vadd.f32 %v810, %v941
      %v1205 = vadd.f32 %v810, %v945
      %v1206 = vadd.f32 %v810, %v949
      %v1207 = vadd.f32 %v810, %v953
      %v1208 = vadd.f32 %v810, %v957
      %v1209 = vadd.f32 %v810, %v961
      %v1210 = vadd.f32 %v813, %v965
      %v1211 = vadd.f32 %v813, %v969
      %v1212 = vadd.f32 %v813, %v973
      %v1213 = vadd.f32 %v813, %v977
      %v1214 = vadd.f32 %v813, %v981
      %v1215 = vadd.f32 %v813, %v985
      %v1216 = vadd.f32 %v813, %v989
      %v1217 = vadd.f32 %v813, %v993
      %v1218 = vadd.f32 %v816, %v997
      %v1219 = vadd.f32 %v816, %v1001
      %v1220 = vadd.f32 %v816, %v1005
      %v1221 = vadd.f32 %v816, %v1009
      %v1222 = vadd.f32 %v816, %v1013
      %v1223 = vadd.f32 %v816, %v1017
      %v1224 = vadd.f32 %v816, %v1021
      %v1225 = vadd.f32 %v816, %v1025
      %v1226 = vadd.f32 %v819, %v1029
      %v1227 = vadd.f32 %v819, %v1033
      %v1228 = vadd.f32 %v819, %v1037
      %v1229 = vadd.f32 %v819, %v1041
      %v1230 = vadd.f32 %v819, %v1045
      %v1231 = vadd.f32 %v819, %v1049
      %v1232 = vadd.f32 %v819, %v1053
      %v1233 = vadd.f32 %v819, %v1057
      %v1234 = vadd.f32 %v822, %v1061
      %v1235 = vadd.f32 %v822, %v1065
      %v1236 = vadd.f32 %v822, %v1069
      %v1237 = vadd.f32 %v822, %v1073
      %v1238 = vadd.f32 %v822, %v1077
      %v1239 = vadd.f32 %v822, %v1081
      %v1240 = vadd.f32 %v822, %v1085
      %v1241 = vadd.f32 %v822, %v1089
      %v1242 = vadd.f32 %v825, %v1093
      %v1243 = vadd.f32 %v825, %v1097
      %v1244 = vadd.f32 %v825, %v1101
      %v1245 = vadd.f32 %v825, %v1105
      %v1246 = vadd.f32 %v825, %v1109
      %v1247 = vadd.f32 %v825, %v1113
      %v1248 = vadd.f32 %v825, %v1117
      %v1249 = vadd.f32 %v825, %v1121
      %v1250 = vmul.f32 %v1186, 0.5
      %v1251 = vmul.f32 %v1187, 0.5
      %v1252 = vmul.f32 %v1188, 0.5
      %v1253 = vmul.f32 %v1189, 0.5
      %v1254 = vmul.f32 %v1190, 0.5
      %v1255 = vmul.f32 %v1191, 0.5
      %v1256 = vmul.f32 %v1192, 0.5
      %v1257 = vmul.f32 %v1193, 0.5
      %v1258 = vmul.f32 %v1194, 0.5
      %v1259 = vmul.f32 %v1195, 0.5
      %v1260 = vmul.f32 %v1196, 0.5
      %v1261 = vmul.f32 %v1197, 0.5
      %v1262 = vmul.f32 %v1198, 0.5
      %v1263 = vmul.f32 %v1199, 0.5
      %v1264 = vmul.f32 %v1200, 0.5
      %v1265 = vmul.f32 %v1201, 0.5
      %v1266 = vmul.f32 %v1202, 0.5
      %v1267 = vmul.f32 %v1203, 0.5
      %v1268 = vmul.f32 %v1204, 0.5
      %v1269 = vmul.f32 %v1205, 0.5
      %v1270 = vmul.f32 %v1206, 0.5
      %v1271 = vmul.f32 %v1207, 0.5
      %v1272 = vmul.f32 %v1208, 0.5
      %v1273 = vmul.f32 %v1209, 0.5
      %v1274 = vmul.f32 %v1210, 0.5
      %v1275 = vmul.f32 %v1211, 0.5
      %v1276 = vmul.f32 %v1212, 0.5
      %v1277 = vmul.f32 %v1213, 0.5
      %v1278 = vmul.f32 %v1214, 0.5
      %v1279 = vmul.f32 %v1215, 0.5
      %v1280 = vmul.f32 %v1216, 0.5
      %v1281 = vmul.f32 %v1217, 0.5
      %v1282 = vmul.f32 %v1218, 0.5
      %v1283 = vmul.f32 %v1219, 0.5
      %v1284 = vmul.f32 %v1220, 0.5
      %v1285 = vmul.f32 %v1221, 0.5
      %v1286 = vmul.f32 %v1222, 0.5
      %v1287 = vmul.f32 %v1223, 0.5
      %v1288 = vmul.f32 %v1224, 0.5
      %v1289 = vmul.f32 %v1225, 0.5
      %v1290 = vmul.f32 %v1226, 0.5
      %v1291 = vmul.f32 %v1227, 0.5
      %v1292 = vmul.f32 %v1228, 0.5
      %v1293 = vmul.f32 %v1229, 0.5
      %v1294 = vmul.f32 %v1230, 0.5
      %v1295 = vmul.f32 %v1231, 0.5
      %v1296 = vmul.f32 %v1232, 0.5
      %v1297 = vmul.f32 %v1233, 0.5
      %v1298 = vmul.f32 %v1234, 0.5
      %v1299 = vmul.f32 %v1235, 0.5
      %v1300 = vmul.f32 %v1236, 0.5
      %v1301 = vmul.f32 %v1237, 0.5
      %v1302 = vmul.f32 %v1238, 0.5
      %v1303 = vmul.f32 %v1239, 0.5
      %v1304 = vmul.f32 %v1240, 0.5
      %v1305 = vmul.f32 %v1241, 0.5
      %v1306 = vmul.f32 %v1242, 0.5
      %v1307 = vmul.f32 %v1243, 0.5
      %v1308 = vmul.f32 %v1244, 0.5
      %v1309 = vmul.f32 %v1245, 0.5
      %v1310 = vmul.f32 %v1246, 0.5
      %v1311 = vmul.f32 %v1247, 0.5
      %v1312 = vmul.f32 %v1248, 0.5
      %v1313 = vmul.f32 %v1249, 0.5
      %v1322 = vlaneseq
      %v1323 = vshrl.u32 %v1322, 7
      %v1324 = vsub.s32 0, %v1323
      %v1325 = vrot.slane %v259, %v1324
      %1327 = vbcast.lane.b32.xlu0 %v1325, 256
      %v1328 = vpop.permute.xlu0 %1327
      %v1329 = vlaneseq
      %v1330 = vshrl.u32 %v1329, 7
      %v1331 = vsub.s32 1, %v1330
      %v1332 = vrot.slane %v259, %v1331
      %1334 = vbcast.lane.b32.xlu0 %v1332, 256
      %v1335 = vpop.permute.xlu0 %1334
      %v1336 = vlaneseq
      %v1337 = vshrl.u32 %v1336, 7
      %v1338 = vsub.s32 2, %v1337
      %v1339 = vrot.slane %v259, %v1338
      %1341 = vbcast.lane.b32.xlu0 %v1339, 256
      %v1342 = vpop.permute.xlu0 %1341
      %v1343 = vlaneseq
      %v1344 = vshrl.u32 %v1343, 7
      %v1345 = vsub.s32 3, %v1344
      %v1346 = vrot.slane %v259, %v1345
      %1348 = vbcast.lane.b32.xlu0 %v1346, 256
      %v1349 = vpop.permute.xlu0 %1348
      %v1350 = vlaneseq
      %v1351 = vshrl.u32 %v1350, 7
      %v1352 = vsub.s32 4, %v1351
      %v1353 = vrot.slane %v259, %v1352
      %1355 = vbcast.lane.b32.xlu0 %v1353, 256
      %v1356 = vpop.permute.xlu0 %1355
      %v1357 = vlaneseq
      %v1358 = vshrl.u32 %v1357, 7
      %v1359 = vsub.s32 5, %v1358
      %v1360 = vrot.slane %v259, %v1359
      %1362 = vbcast.lane.b32.xlu0 %v1360, 256
      %v1363 = vpop.permute.xlu0 %1362
      %v1364 = vlaneseq
      %v1365 = vshrl.u32 %v1364, 7
      %v1366 = vsub.s32 6, %v1365
      %v1367 = vrot.slane %v259, %v1366
      %1369 = vbcast.lane.b32.xlu0 %v1367, 256
      %v1370 = vpop.permute.xlu0 %1369
      %v1371 = vlaneseq
      %v1372 = vshrl.u32 %v1371, 7
      %v1373 = vsub.s32 7, %v1372
      %v1374 = vrot.slane %v259, %v1373
      %1376 = vbcast.lane.b32.xlu0 %v1374, 256
      %v1377 = vpop.permute.xlu0 %1376
      %v1378 = vlaneseq
      %v1379 = vshrl.u32 %v1378, 7
      %v1380 = vsub.s32 0, %v1379
      %v1381 = vrot.slane %v335, %v1380
      %1383 = vbcast.lane.b32.xlu0 %v1381, 256
      %v1384 = vpop.permute.xlu0 %1383
      %v1385 = vlaneseq
      %v1386 = vshrl.u32 %v1385, 7
      %v1387 = vsub.s32 1, %v1386
      %v1388 = vrot.slane %v335, %v1387
      %1390 = vbcast.lane.b32.xlu0 %v1388, 256
      %v1391 = vpop.permute.xlu0 %1390
      %v1392 = vlaneseq
      %v1393 = vshrl.u32 %v1392, 7
      %v1394 = vsub.s32 2, %v1393
      %v1395 = vrot.slane %v335, %v1394
      %1397 = vbcast.lane.b32.xlu0 %v1395, 256
      %v1398 = vpop.permute.xlu0 %1397
      %v1399 = vlaneseq
      %v1400 = vshrl.u32 %v1399, 7
      %v1401 = vsub.s32 3, %v1400
      %v1402 = vrot.slane %v335, %v1401
      %1404 = vbcast.lane.b32.xlu0 %v1402, 256
      %v1405 = vpop.permute.xlu0 %1404
      %v1406 = vlaneseq
      %v1407 = vshrl.u32 %v1406, 7
      %v1408 = vsub.s32 4, %v1407
      %v1409 = vrot.slane %v335, %v1408
      %1411 = vbcast.lane.b32.xlu0 %v1409, 256
      %v1412 = vpop.permute.xlu0 %1411
      %v1413 = vlaneseq
      %v1414 = vshrl.u32 %v1413, 7
      %v1415 = vsub.s32 5, %v1414
      %v1416 = vrot.slane %v335, %v1415
      %1418 = vbcast.lane.b32.xlu0 %v1416, 256
      %v1419 = vpop.permute.xlu0 %1418
      %v1420 = vlaneseq
      %v1421 = vshrl.u32 %v1420, 7
      %v1422 = vsub.s32 6, %v1421
      %v1423 = vrot.slane %v335, %v1422
      %1425 = vbcast.lane.b32.xlu0 %v1423, 256
      %v1426 = vpop.permute.xlu0 %1425
      %v1427 = vlaneseq
      %v1428 = vshrl.u32 %v1427, 7
      %v1429 = vsub.s32 7, %v1428
      %v1430 = vrot.slane %v335, %v1429
      %1432 = vbcast.lane.b32.xlu0 %v1430, 256
      %v1433 = vpop.permute.xlu0 %1432
      %v1434 = vlaneseq
      %v1435 = vshrl.u32 %v1434, 7
      %v1436 = vsub.s32 0, %v1435
      %v1437 = vrot.slane %v411, %v1436
      %1439 = vbcast.lane.b32.xlu0 %v1437, 256
      %v1440 = vpop.permute.xlu0 %1439
      %v1441 = vlaneseq
      %v1442 = vshrl.u32 %v1441, 7
      %v1443 = vsub.s32 1, %v1442
      %v1444 = vrot.slane %v411, %v1443
      %1446 = vbcast.lane.b32.xlu0 %v1444, 256
      %v1447 = vpop.permute.xlu0 %1446
      %v1448 = vlaneseq
      %v1449 = vshrl.u32 %v1448, 7
      %v1450 = vsub.s32 2, %v1449
      %v1451 = vrot.slane %v411, %v1450
      %1453 = vbcast.lane.b32.xlu0 %v1451, 256
      %v1454 = vpop.permute.xlu0 %1453
      %v1455 = vlaneseq
      %v1456 = vshrl.u32 %v1455, 7
      %v1457 = vsub.s32 3, %v1456
      %v1458 = vrot.slane %v411, %v1457
      %1460 = vbcast.lane.b32.xlu0 %v1458, 256
      %v1461 = vpop.permute.xlu0 %1460
      %v1462 = vlaneseq
      %v1463 = vshrl.u32 %v1462, 7
      %v1464 = vsub.s32 4, %v1463
      %v1465 = vrot.slane %v411, %v1464
      %1467 = vbcast.lane.b32.xlu0 %v1465, 256
      %v1468 = vpop.permute.xlu0 %1467
      %v1469 = vlaneseq
      %v1470 = vshrl.u32 %v1469, 7
      %v1471 = vsub.s32 5, %v1470
      %v1472 = vrot.slane %v411, %v1471
      %1474 = vbcast.lane.b32.xlu0 %v1472, 256
      %v1475 = vpop.permute.xlu0 %1474
      %v1476 = vlaneseq
      %v1477 = vshrl.u32 %v1476, 7
      %v1478 = vsub.s32 6, %v1477
      %v1479 = vrot.slane %v411, %v1478
      %1481 = vbcast.lane.b32.xlu0 %v1479, 256
      %v1482 = vpop.permute.xlu0 %1481
      %v1483 = vlaneseq
      %v1484 = vshrl.u32 %v1483, 7
      %v1485 = vsub.s32 7, %v1484
      %v1486 = vrot.slane %v411, %v1485
      %1488 = vbcast.lane.b32.xlu0 %v1486, 256
      %v1489 = vpop.permute.xlu0 %1488
      %v1490 = vlaneseq
      %v1491 = vshrl.u32 %v1490, 7
      %v1492 = vsub.s32 0, %v1491
      %v1493 = vrot.slane %v487, %v1492
      %1495 = vbcast.lane.b32.xlu0 %v1493, 256
      %v1496 = vpop.permute.xlu0 %1495
      %v1497 = vlaneseq
      %v1498 = vshrl.u32 %v1497, 7
      %v1499 = vsub.s32 1, %v1498
      %v1500 = vrot.slane %v487, %v1499
      %1502 = vbcast.lane.b32.xlu0 %v1500, 256
      %v1503 = vpop.permute.xlu0 %1502
      %v1504 = vlaneseq
      %v1505 = vshrl.u32 %v1504, 7
      %v1506 = vsub.s32 2, %v1505
      %v1507 = vrot.slane %v487, %v1506
      %1509 = vbcast.lane.b32.xlu0 %v1507, 256
      %v1510 = vpop.permute.xlu0 %1509
      %v1511 = vlaneseq
      %v1512 = vshrl.u32 %v1511, 7
      %v1513 = vsub.s32 3, %v1512
      %v1514 = vrot.slane %v487, %v1513
      %1516 = vbcast.lane.b32.xlu0 %v1514, 256
      %v1517 = vpop.permute.xlu0 %1516
      %v1518 = vlaneseq
      %v1519 = vshrl.u32 %v1518, 7
      %v1520 = vsub.s32 4, %v1519
      %v1521 = vrot.slane %v487, %v1520
      %1523 = vbcast.lane.b32.xlu0 %v1521, 256
      %v1524 = vpop.permute.xlu0 %1523
      %v1525 = vlaneseq
      %v1526 = vshrl.u32 %v1525, 7
      %v1527 = vsub.s32 5, %v1526
      %v1528 = vrot.slane %v487, %v1527
      %1530 = vbcast.lane.b32.xlu0 %v1528, 256
      %v1531 = vpop.permute.xlu0 %1530
      %v1532 = vlaneseq
      %v1533 = vshrl.u32 %v1532, 7
      %v1534 = vsub.s32 6, %v1533
      %v1535 = vrot.slane %v487, %v1534
      %1537 = vbcast.lane.b32.xlu0 %v1535, 256
      %v1538 = vpop.permute.xlu0 %1537
      %v1539 = vlaneseq
      %v1540 = vshrl.u32 %v1539, 7
      %v1541 = vsub.s32 7, %v1540
      %v1542 = vrot.slane %v487, %v1541
      %1544 = vbcast.lane.b32.xlu0 %v1542, 256
      %v1545 = vpop.permute.xlu0 %1544
      %v1546 = vlaneseq
      %v1547 = vshrl.u32 %v1546, 7
      %v1548 = vsub.s32 0, %v1547
      %v1549 = vrot.slane %v563, %v1548
      %1551 = vbcast.lane.b32.xlu0 %v1549, 256
      %v1552 = vpop.permute.xlu0 %1551
      %v1553 = vlaneseq
      %v1554 = vshrl.u32 %v1553, 7
      %v1555 = vsub.s32 1, %v1554
      %v1556 = vrot.slane %v563, %v1555
      %1558 = vbcast.lane.b32.xlu0 %v1556, 256
      %v1559 = vpop.permute.xlu0 %1558
      %v1560 = vlaneseq
      %v1561 = vshrl.u32 %v1560, 7
      %v1562 = vsub.s32 2, %v1561
      %v1563 = vrot.slane %v563, %v1562
      %1565 = vbcast.lane.b32.xlu0 %v1563, 256
      %v1566 = vpop.permute.xlu0 %1565
      %v1567 = vlaneseq
      %v1568 = vshrl.u32 %v1567, 7
      %v1569 = vsub.s32 3, %v1568
      %v1570 = vrot.slane %v563, %v1569
      %1572 = vbcast.lane.b32.xlu0 %v1570, 256
      %v1573 = vpop.permute.xlu0 %1572
      %v1574 = vlaneseq
      %v1575 = vshrl.u32 %v1574, 7
      %v1576 = vsub.s32 4, %v1575
      %v1577 = vrot.slane %v563, %v1576
      %1579 = vbcast.lane.b32.xlu0 %v1577, 256
      %v1580 = vpop.permute.xlu0 %1579
      %v1581 = vlaneseq
      %v1582 = vshrl.u32 %v1581, 7
      %v1583 = vsub.s32 5, %v1582
      %v1584 = vrot.slane %v563, %v1583
      %1586 = vbcast.lane.b32.xlu0 %v1584, 256
      %v1587 = vpop.permute.xlu0 %1586
      %v1588 = vlaneseq
      %v1589 = vshrl.u32 %v1588, 7
      %v1590 = vsub.s32 6, %v1589
      %v1591 = vrot.slane %v563, %v1590
      %1593 = vbcast.lane.b32.xlu0 %v1591, 256
      %v1594 = vpop.permute.xlu0 %1593
      %v1595 = vlaneseq
      %v1596 = vshrl.u32 %v1595, 7
      %v1597 = vsub.s32 7, %v1596
      %v1598 = vrot.slane %v563, %v1597
      %1600 = vbcast.lane.b32.xlu0 %v1598, 256
      %v1601 = vpop.permute.xlu0 %1600
      %v1602 = vlaneseq
      %v1603 = vshrl.u32 %v1602, 7
      %v1604 = vsub.s32 0, %v1603
      %v1605 = vrot.slane %v639, %v1604
      %1607 = vbcast.lane.b32.xlu0 %v1605, 256
      %v1608 = vpop.permute.xlu0 %1607
      %v1609 = vlaneseq
      %v1610 = vshrl.u32 %v1609, 7
      %v1611 = vsub.s32 1, %v1610
      %v1612 = vrot.slane %v639, %v1611
      %1614 = vbcast.lane.b32.xlu0 %v1612, 256
      %v1615 = vpop.permute.xlu0 %1614
      %v1616 = vlaneseq
      %v1617 = vshrl.u32 %v1616, 7
      %v1618 = vsub.s32 2, %v1617
      %v1619 = vrot.slane %v639, %v1618
      %1621 = vbcast.lane.b32.xlu0 %v1619, 256
      %v1622 = vpop.permute.xlu0 %1621
      %v1623 = vlaneseq
      %v1624 = vshrl.u32 %v1623, 7
      %v1625 = vsub.s32 3, %v1624
      %v1626 = vrot.slane %v639, %v1625
      %1628 = vbcast.lane.b32.xlu0 %v1626, 256
      %v1629 = vpop.permute.xlu0 %1628
      %v1630 = vlaneseq
      %v1631 = vshrl.u32 %v1630, 7
      %v1632 = vsub.s32 4, %v1631
      %v1633 = vrot.slane %v639, %v1632
      %1635 = vbcast.lane.b32.xlu0 %v1633, 256
      %v1636 = vpop.permute.xlu0 %1635
      %v1637 = vlaneseq
      %v1638 = vshrl.u32 %v1637, 7
      %v1639 = vsub.s32 5, %v1638
      %v1640 = vrot.slane %v639, %v1639
      %1642 = vbcast.lane.b32.xlu0 %v1640, 256
      %v1643 = vpop.permute.xlu0 %1642
      %v1644 = vlaneseq
      %v1645 = vshrl.u32 %v1644, 7
      %v1646 = vsub.s32 6, %v1645
      %v1647 = vrot.slane %v639, %v1646
      %1649 = vbcast.lane.b32.xlu0 %v1647, 256
      %v1650 = vpop.permute.xlu0 %1649
      %v1651 = vlaneseq
      %v1652 = vshrl.u32 %v1651, 7
      %v1653 = vsub.s32 7, %v1652
      %v1654 = vrot.slane %v639, %v1653
      %1656 = vbcast.lane.b32.xlu0 %v1654, 256
      %v1657 = vpop.permute.xlu0 %1656
      %v1658 = vlaneseq
      %v1659 = vshrl.u32 %v1658, 7
      %v1660 = vsub.s32 0, %v1659
      %v1661 = vrot.slane %v715, %v1660
      %1663 = vbcast.lane.b32.xlu0 %v1661, 256
      %v1664 = vpop.permute.xlu0 %1663
      %v1665 = vlaneseq
      %v1666 = vshrl.u32 %v1665, 7
      %v1667 = vsub.s32 1, %v1666
      %v1668 = vrot.slane %v715, %v1667
      %1670 = vbcast.lane.b32.xlu0 %v1668, 256
      %v1671 = vpop.permute.xlu0 %1670
      %v1672 = vlaneseq
      %v1673 = vshrl.u32 %v1672, 7
      %v1674 = vsub.s32 2, %v1673
      %v1675 = vrot.slane %v715, %v1674
      %1677 = vbcast.lane.b32.xlu0 %v1675, 256
      %v1678 = vpop.permute.xlu0 %1677
      %v1679 = vlaneseq
      %v1680 = vshrl.u32 %v1679, 7
      %v1681 = vsub.s32 3, %v1680
      %v1682 = vrot.slane %v715, %v1681
      %1684 = vbcast.lane.b32.xlu0 %v1682, 256
      %v1685 = vpop.permute.xlu0 %1684
      %v1686 = vlaneseq
      %v1687 = vshrl.u32 %v1686, 7
      %v1688 = vsub.s32 4, %v1687
      %v1689 = vrot.slane %v715, %v1688
      %1691 = vbcast.lane.b32.xlu0 %v1689, 256
      %v1692 = vpop.permute.xlu0 %1691
      %v1693 = vlaneseq
      %v1694 = vshrl.u32 %v1693, 7
      %v1695 = vsub.s32 5, %v1694
      %v1696 = vrot.slane %v715, %v1695
      %1698 = vbcast.lane.b32.xlu0 %v1696, 256
      %v1699 = vpop.permute.xlu0 %1698
      %v1700 = vlaneseq
      %v1701 = vshrl.u32 %v1700, 7
      %v1702 = vsub.s32 6, %v1701
      %v1703 = vrot.slane %v715, %v1702
      %1705 = vbcast.lane.b32.xlu0 %v1703, 256
      %v1706 = vpop.permute.xlu0 %1705
      %v1707 = vlaneseq
      %v1708 = vshrl.u32 %v1707, 7
      %v1709 = vsub.s32 7, %v1708
      %v1710 = vrot.slane %v715, %v1709
      %1712 = vbcast.lane.b32.xlu0 %v1710, 256
      %v1713 = vpop.permute.xlu0 %1712
      %v1714 = vlaneseq
      %v1715 = vshrl.u32 %v1714, 7
      %v1716 = vsub.s32 0, %v1715
      %v1717 = vrot.slane %v791, %v1716
      %1719 = vbcast.lane.b32.xlu0 %v1717, 256
      %v1720 = vpop.permute.xlu0 %1719
      %v1721 = vlaneseq
      %v1722 = vshrl.u32 %v1721, 7
      %v1723 = vsub.s32 1, %v1722
      %v1724 = vrot.slane %v791, %v1723
      %1726 = vbcast.lane.b32.xlu0 %v1724, 256
      %v1727 = vpop.permute.xlu0 %1726
      %v1728 = vlaneseq
      %v1729 = vshrl.u32 %v1728, 7
      %v1730 = vsub.s32 2, %v1729
      %v1731 = vrot.slane %v791, %v1730
      %1733 = vbcast.lane.b32.xlu0 %v1731, 256
      %v1734 = vpop.permute.xlu0 %1733
      %v1735 = vlaneseq
      %v1736 = vshrl.u32 %v1735, 7
      %v1737 = vsub.s32 3, %v1736
      %v1738 = vrot.slane %v791, %v1737
      %1740 = vbcast.lane.b32.xlu0 %v1738, 256
      %v1741 = vpop.permute.xlu0 %1740
      %v1742 = vlaneseq
      %v1743 = vshrl.u32 %v1742, 7
      %v1744 = vsub.s32 4, %v1743
      %v1745 = vrot.slane %v791, %v1744
      %1747 = vbcast.lane.b32.xlu0 %v1745, 256
      %v1748 = vpop.permute.xlu0 %1747
      %v1749 = vlaneseq
      %v1750 = vshrl.u32 %v1749, 7
      %v1751 = vsub.s32 5, %v1750
      %v1752 = vrot.slane %v791, %v1751
      %1754 = vbcast.lane.b32.xlu0 %v1752, 256
      %v1755 = vpop.permute.xlu0 %1754
      %v1756 = vlaneseq
      %v1757 = vshrl.u32 %v1756, 7
      %v1758 = vsub.s32 6, %v1757
      %v1759 = vrot.slane %v791, %v1758
      %1761 = vbcast.lane.b32.xlu0 %v1759, 256
      %v1762 = vpop.permute.xlu0 %1761
      %v1763 = vlaneseq
      %v1764 = vshrl.u32 %v1763, 7
      %v1765 = vsub.s32 7, %v1764
      %v1766 = vrot.slane %v791, %v1765
      %1768 = vbcast.lane.b32.xlu0 %v1766, 256
      %v1769 = vpop.permute.xlu0 %1768
      %v1834 = vsub.f32 %v1250, %v1328
      %v1835 = vsub.f32 %v1251, %v1335
      %v1836 = vsub.f32 %v1252, %v1342
      %v1837 = vsub.f32 %v1253, %v1349
      %v1838 = vsub.f32 %v1254, %v1356
      %v1839 = vsub.f32 %v1255, %v1363
      %v1840 = vsub.f32 %v1256, %v1370
      %v1841 = vsub.f32 %v1257, %v1377
      %v1842 = vsub.f32 %v1258, %v1384
      %v1843 = vsub.f32 %v1259, %v1391
      %v1844 = vsub.f32 %v1260, %v1398
      %v1845 = vsub.f32 %v1261, %v1405
      %v1846 = vsub.f32 %v1262, %v1412
      %v1847 = vsub.f32 %v1263, %v1419
      %v1848 = vsub.f32 %v1264, %v1426
      %v1849 = vsub.f32 %v1265, %v1433
      %v1850 = vsub.f32 %v1266, %v1440
      %v1851 = vsub.f32 %v1267, %v1447
      %v1852 = vsub.f32 %v1268, %v1454
      %v1853 = vsub.f32 %v1269, %v1461
      %v1854 = vsub.f32 %v1270, %v1468
      %v1855 = vsub.f32 %v1271, %v1475
      %v1856 = vsub.f32 %v1272, %v1482
      %v1857 = vsub.f32 %v1273, %v1489
      %v1858 = vsub.f32 %v1274, %v1496
      %v1859 = vsub.f32 %v1275, %v1503
      %v1860 = vsub.f32 %v1276, %v1510
      %v1861 = vsub.f32 %v1277, %v1517
      %v1862 = vsub.f32 %v1278, %v1524
      %v1863 = vsub.f32 %v1279, %v1531
      %v1864 = vsub.f32 %v1280, %v1538
      %v1865 = vsub.f32 %v1281, %v1545
      %v1866 = vsub.f32 %v1282, %v1552
      %v1867 = vsub.f32 %v1283, %v1559
      %v1868 = vsub.f32 %v1284, %v1566
      %v1869 = vsub.f32 %v1285, %v1573
      %v1870 = vsub.f32 %v1286, %v1580
      %v1871 = vsub.f32 %v1287, %v1587
      %v1872 = vsub.f32 %v1288, %v1594
      %v1873 = vsub.f32 %v1289, %v1601
      %v1874 = vsub.f32 %v1290, %v1608
      %v1875 = vsub.f32 %v1291, %v1615
      %v1876 = vsub.f32 %v1292, %v1622
      %v1877 = vsub.f32 %v1293, %v1629
      %v1878 = vsub.f32 %v1294, %v1636
      %v1879 = vsub.f32 %v1295, %v1643
      %v1880 = vsub.f32 %v1296, %v1650
      %v1881 = vsub.f32 %v1297, %v1657
      %v1882 = vsub.f32 %v1298, %v1664
      %v1883 = vsub.f32 %v1299, %v1671
      %v1884 = vsub.f32 %v1300, %v1678
      %v1885 = vsub.f32 %v1301, %v1685
      %v1886 = vsub.f32 %v1302, %v1692
      %v1887 = vsub.f32 %v1303, %v1699
      %v1888 = vsub.f32 %v1304, %v1706
      %v1889 = vsub.f32 %v1305, %v1713
      %v1890 = vsub.f32 %v1306, %v1720
      %v1891 = vsub.f32 %v1307, %v1727
      %v1892 = vsub.f32 %v1308, %v1734
      %v1893 = vsub.f32 %v1309, %v1741
      %v1894 = vsub.f32 %v1310, %v1748
      %v1895 = vsub.f32 %v1311, %v1755
      %v1896 = vsub.f32 %v1312, %v1762
      %v1897 = vsub.f32 %v1313, %v1769
      %1962 = vset.pattern.permute.xlu0 0
      %1963 = vperm.xlu0 %1962, %v1834
      %v1964 = vpop.permute.xlu0 %1963
      %1965 = vset.pattern.permute.xlu0 0
      %1966 = vperm.xlu0 %1965, %v1835
      %v1967 = vpop.permute.xlu0 %1966
      %1968 = vset.pattern.permute.xlu0 0
      %1969 = vperm.xlu0 %1968, %v1836
      %v1970 = vpop.permute.xlu0 %1969
      %1971 = vset.pattern.permute.xlu0 0
      %1972 = vperm.xlu0 %1971, %v1837
      %v1973 = vpop.permute.xlu0 %1972
      %1974 = vset.pattern.permute.xlu0 0
      %1975 = vperm.xlu0 %1974, %v1838
      %v1976 = vpop.permute.xlu0 %1975
      %1977 = vset.pattern.permute.xlu0 0
      %1978 = vperm.xlu0 %1977, %v1839
      %v1979 = vpop.permute.xlu0 %1978
      %1980 = vset.pattern.permute.xlu0 0
      %1981 = vperm.xlu0 %1980, %v1840
      %v1982 = vpop.permute.xlu0 %1981
      %1983 = vset.pattern.permute.xlu0 0
      %1984 = vperm.xlu0 %1983, %v1841
      %v1985 = vpop.permute.xlu0 %1984
      %1986 = vset.pattern.permute.xlu0 0
      %1987 = vperm.xlu0 %1986, %v1842
      %v1988 = vpop.permute.xlu0 %1987
      %1989 = vset.pattern.permute.xlu0 0
      %1990 = vperm.xlu0 %1989, %v1843
      %v1991 = vpop.permute.xlu0 %1990
      %1992 = vset.pattern.permute.xlu0 0
      %1993 = vperm.xlu0 %1992, %v1844
      %v1994 = vpop.permute.xlu0 %1993
      %1995 = vset.pattern.permute.xlu0 0
      %1996 = vperm.xlu0 %1995, %v1845
      %v1997 = vpop.permute.xlu0 %1996
      %1998 = vset.pattern.permute.xlu0 0
      %1999 = vperm.xlu0 %1998, %v1846
      %v2000 = vpop.permute.xlu0 %1999
      %2001 = vset.pattern.permute.xlu0 0
      %2002 = vperm.xlu0 %2001, %v1847
      %v2003 = vpop.permute.xlu0 %2002
      %2004 = vset.pattern.permute.xlu0 0
      %2005 = vperm.xlu0 %2004, %v1848
      %v2006 = vpop.permute.xlu0 %2005
      %2007 = vset.pattern.permute.xlu0 0
      %2008 = vperm.xlu0 %2007, %v1849
      %v2009 = vpop.permute.xlu0 %2008
      %2010 = vset.pattern.permute.xlu0 0
      %2011 = vperm.xlu0 %2010, %v1850
      %v2012 = vpop.permute.xlu0 %2011
      %2013 = vset.pattern.permute.xlu0 0
      %2014 = vperm.xlu0 %2013, %v1851
      %v2015 = vpop.permute.xlu0 %2014
      %2016 = vset.pattern.permute.xlu0 0
      %2017 = vperm.xlu0 %2016, %v1852
      %v2018 = vpop.permute.xlu0 %2017
      %2019 = vset.pattern.permute.xlu0 0
      %2020 = vperm.xlu0 %2019, %v1853
      %v2021 = vpop.permute.xlu0 %2020
      %2022 = vset.pattern.permute.xlu0 0
      %2023 = vperm.xlu0 %2022, %v1854
      %v2024 = vpop.permute.xlu0 %2023
      %2025 = vset.pattern.permute.xlu0 0
      %2026 = vperm.xlu0 %2025, %v1855
      %v2027 = vpop.permute.xlu0 %2026
      %2028 = vset.pattern.permute.xlu0 0
      %2029 = vperm.xlu0 %2028, %v1856
      %v2030 = vpop.permute.xlu0 %2029
      %2031 = vset.pattern.permute.xlu0 0
      %2032 = vperm.xlu0 %2031, %v1857
      %v2033 = vpop.permute.xlu0 %2032
      %2034 = vset.pattern.permute.xlu0 0
      %2035 = vperm.xlu0 %2034, %v1858
      %v2036 = vpop.permute.xlu0 %2035
      %2037 = vset.pattern.permute.xlu0 0
      %2038 = vperm.xlu0 %2037, %v1859
      %v2039 = vpop.permute.xlu0 %2038
      %2040 = vset.pattern.permute.xlu0 0
      %2041 = vperm.xlu0 %2040, %v1860
      %v2042 = vpop.permute.xlu0 %2041
      %2043 = vset.pattern.permute.xlu0 0
      %2044 = vperm.xlu0 %2043, %v1861
      %v2045 = vpop.permute.xlu0 %2044
      %2046 = vset.pattern.permute.xlu0 0
      %2047 = vperm.xlu0 %2046, %v1862
      %v2048 = vpop.permute.xlu0 %2047
      %2049 = vset.pattern.permute.xlu0 0
      %2050 = vperm.xlu0 %2049, %v1863
      %v2051 = vpop.permute.xlu0 %2050
      %2052 = vset.pattern.permute.xlu0 0
      %2053 = vperm.xlu0 %2052, %v1864
      %v2054 = vpop.permute.xlu0 %2053
      %2055 = vset.pattern.permute.xlu0 0
      %2056 = vperm.xlu0 %2055, %v1865
      %v2057 = vpop.permute.xlu0 %2056
      %2058 = vset.pattern.permute.xlu0 0
      %2059 = vperm.xlu0 %2058, %v1866
      %v2060 = vpop.permute.xlu0 %2059
      %2061 = vset.pattern.permute.xlu0 0
      %2062 = vperm.xlu0 %2061, %v1867
      %v2063 = vpop.permute.xlu0 %2062
      %2064 = vset.pattern.permute.xlu0 0
      %2065 = vperm.xlu0 %2064, %v1868
      %v2066 = vpop.permute.xlu0 %2065
      %2067 = vset.pattern.permute.xlu0 0
      %2068 = vperm.xlu0 %2067, %v1869
      %v2069 = vpop.permute.xlu0 %2068
      %2070 = vset.pattern.permute.xlu0 0
      %2071 = vperm.xlu0 %2070, %v1870
      %v2072 = vpop.permute.xlu0 %2071
      %2073 = vset.pattern.permute.xlu0 0
      %2074 = vperm.xlu0 %2073, %v1871
      %v2075 = vpop.permute.xlu0 %2074
      %2076 = vset.pattern.permute.xlu0 0
      %2077 = vperm.xlu0 %2076, %v1872
      %v2078 = vpop.permute.xlu0 %2077
      %2079 = vset.pattern.permute.xlu0 0
      %2080 = vperm.xlu0 %2079, %v1873
      %v2081 = vpop.permute.xlu0 %2080
      %2082 = vset.pattern.permute.xlu0 0
      %2083 = vperm.xlu0 %2082, %v1874
      %v2084 = vpop.permute.xlu0 %2083
      %2085 = vset.pattern.permute.xlu0 0
      %2086 = vperm.xlu0 %2085, %v1875
      %v2087 = vpop.permute.xlu0 %2086
      %2088 = vset.pattern.permute.xlu0 0
      %2089 = vperm.xlu0 %2088, %v1876
      %v2090 = vpop.permute.xlu0 %2089
      %2091 = vset.pattern.permute.xlu0 0
      %2092 = vperm.xlu0 %2091, %v1877
      %v2093 = vpop.permute.xlu0 %2092
      %2094 = vset.pattern.permute.xlu0 0
      %2095 = vperm.xlu0 %2094, %v1878
      %v2096 = vpop.permute.xlu0 %2095
      %2097 = vset.pattern.permute.xlu0 0
      %2098 = vperm.xlu0 %2097, %v1879
      %v2099 = vpop.permute.xlu0 %2098
      %2100 = vset.pattern.permute.xlu0 0
      %2101 = vperm.xlu0 %2100, %v1880
      %v2102 = vpop.permute.xlu0 %2101
      %2103 = vset.pattern.permute.xlu0 0
      %2104 = vperm.xlu0 %2103, %v1881
      %v2105 = vpop.permute.xlu0 %2104
      %2106 = vset.pattern.permute.xlu0 0
      %2107 = vperm.xlu0 %2106, %v1882
      %v2108 = vpop.permute.xlu0 %2107
      %2109 = vset.pattern.permute.xlu0 0
      %2110 = vperm.xlu0 %2109, %v1883
      %v2111 = vpop.permute.xlu0 %2110
      %2112 = vset.pattern.permute.xlu0 0
      %2113 = vperm.xlu0 %2112, %v1884
      %v2114 = vpop.permute.xlu0 %2113
      %2115 = vset.pattern.permute.xlu0 0
      %2116 = vperm.xlu0 %2115, %v1885
      %v2117 = vpop.permute.xlu0 %2116
      %2118 = vset.pattern.permute.xlu0 0
      %2119 = vperm.xlu0 %2118, %v1886
      %v2120 = vpop.permute.xlu0 %2119
      %2121 = vset.pattern.permute.xlu0 0
      %2122 = vperm.xlu0 %2121, %v1887
      %v2123 = vpop.permute.xlu0 %2122
      %2124 = vset.pattern.permute.xlu0 0
      %2125 = vperm.xlu0 %2124, %v1888
      %v2126 = vpop.permute.xlu0 %2125
      %2127 = vset.pattern.permute.xlu0 0
      %2128 = vperm.xlu0 %2127, %v1889
      %v2129 = vpop.permute.xlu0 %2128
      %2130 = vset.pattern.permute.xlu0 0
      %2131 = vperm.xlu0 %2130, %v1890
      %v2132 = vpop.permute.xlu0 %2131
      %2133 = vset.pattern.permute.xlu0 0
      %2134 = vperm.xlu0 %2133, %v1891
      %v2135 = vpop.permute.xlu0 %2134
      %2136 = vset.pattern.permute.xlu0 0
      %2137 = vperm.xlu0 %2136, %v1892
      %v2138 = vpop.permute.xlu0 %2137
      %2139 = vset.pattern.permute.xlu0 0
      %2140 = vperm.xlu0 %2139, %v1893
      %v2141 = vpop.permute.xlu0 %2140
      %2142 = vset.pattern.permute.xlu0 0
      %2143 = vperm.xlu0 %2142, %v1894
      %v2144 = vpop.permute.xlu0 %2143
      %2145 = vset.pattern.permute.xlu0 0
      %2146 = vperm.xlu0 %2145, %v1895
      %v2147 = vpop.permute.xlu0 %2146
      %2148 = vset.pattern.permute.xlu0 0
      %2149 = vperm.xlu0 %2148, %v1896
      %v2150 = vpop.permute.xlu0 %2149
      %2151 = vset.pattern.permute.xlu0 0
      %2152 = vperm.xlu0 %2151, %v1897
      %v2153 = vpop.permute.xlu0 %2152
      %v2154 = vlaneseq
      %v2155 = vand.u32 %v2154, 127
      %v2156 = vlaneseq
      %v2157 = vshrl.u32 %v2156, 7
      %v2158 = vsub.s32 %v2155, %v2157
      %v2159 = vrot.slane %v1964, %v2158
      %v2160 = vlaneseq
      %v2161 = vshrl.u32 %v2160, 7
      %v2162 = vsub.s32 %v2155, %v2161
      %v2163 = vrot.slane %v1967, %v2162
      %v2164 = vlaneseq
      %v2165 = vshrl.u32 %v2164, 7
      %v2166 = vsub.s32 %v2155, %v2165
      %v2167 = vrot.slane %v1970, %v2166
      %v2168 = vlaneseq
      %v2169 = vshrl.u32 %v2168, 7
      %v2170 = vsub.s32 %v2155, %v2169
      %v2171 = vrot.slane %v1973, %v2170
      %v2172 = vlaneseq
      %v2173 = vshrl.u32 %v2172, 7
      %v2174 = vsub.s32 %v2155, %v2173
      %v2175 = vrot.slane %v1976, %v2174
      %v2176 = vlaneseq
      %v2177 = vshrl.u32 %v2176, 7
      %v2178 = vsub.s32 %v2155, %v2177
      %v2179 = vrot.slane %v1979, %v2178
      %v2180 = vlaneseq
      %v2181 = vshrl.u32 %v2180, 7
      %v2182 = vsub.s32 %v2155, %v2181
      %v2183 = vrot.slane %v1982, %v2182
      %v2184 = vlaneseq
      %v2185 = vshrl.u32 %v2184, 7
      %v2186 = vsub.s32 %v2155, %v2185
      %v2187 = vrot.slane %v1985, %v2186
      %v2188 = vlaneseq
      %v2189 = vshrl.u32 %v2188, 7
      %v2190 = vsub.s32 %v2155, %v2189
      %v2191 = vrot.slane %v1988, %v2190
      %v2192 = vlaneseq
      %v2193 = vshrl.u32 %v2192, 7
      %v2194 = vsub.s32 %v2155, %v2193
      %v2195 = vrot.slane %v1991, %v2194
      %v2196 = vlaneseq
      %v2197 = vshrl.u32 %v2196, 7
      %v2198 = vsub.s32 %v2155, %v2197
      %v2199 = vrot.slane %v1994, %v2198
      %v2200 = vlaneseq
      %v2201 = vshrl.u32 %v2200, 7
      %v2202 = vsub.s32 %v2155, %v2201
      %v2203 = vrot.slane %v1997, %v2202
      %v2204 = vlaneseq
      %v2205 = vshrl.u32 %v2204, 7
      %v2206 = vsub.s32 %v2155, %v2205
      %v2207 = vrot.slane %v2000, %v2206
      %v2208 = vlaneseq
      %v2209 = vshrl.u32 %v2208, 7
      %v2210 = vsub.s32 %v2155, %v2209
      %v2211 = vrot.slane %v2003, %v2210
      %v2212 = vlaneseq
      %v2213 = vshrl.u32 %v2212, 7
      %v2214 = vsub.s32 %v2155, %v2213
      %v2215 = vrot.slane %v2006, %v2214
      %v2216 = vlaneseq
      %v2217 = vshrl.u32 %v2216, 7
      %v2218 = vsub.s32 %v2155, %v2217
      %v2219 = vrot.slane %v2009, %v2218
      %v2220 = vlaneseq
      %v2221 = vshrl.u32 %v2220, 7
      %v2222 = vsub.s32 %v2155, %v2221
      %v2223 = vrot.slane %v2012, %v2222
      %v2224 = vlaneseq
      %v2225 = vshrl.u32 %v2224, 7
      %v2226 = vsub.s32 %v2155, %v2225
      %v2227 = vrot.slane %v2015, %v2226
      %v2228 = vlaneseq
      %v2229 = vshrl.u32 %v2228, 7
      %v2230 = vsub.s32 %v2155, %v2229
      %v2231 = vrot.slane %v2018, %v2230
      %v2232 = vlaneseq
      %v2233 = vshrl.u32 %v2232, 7
      %v2234 = vsub.s32 %v2155, %v2233
      %v2235 = vrot.slane %v2021, %v2234
      %v2236 = vlaneseq
      %v2237 = vshrl.u32 %v2236, 7
      %v2238 = vsub.s32 %v2155, %v2237
      %v2239 = vrot.slane %v2024, %v2238
      %v2240 = vlaneseq
      %v2241 = vshrl.u32 %v2240, 7
      %v2242 = vsub.s32 %v2155, %v2241
      %v2243 = vrot.slane %v2027, %v2242
      %v2244 = vlaneseq
      %v2245 = vshrl.u32 %v2244, 7
      %v2246 = vsub.s32 %v2155, %v2245
      %v2247 = vrot.slane %v2030, %v2246
      %v2248 = vlaneseq
      %v2249 = vshrl.u32 %v2248, 7
      %v2250 = vsub.s32 %v2155, %v2249
      %v2251 = vrot.slane %v2033, %v2250
      %v2252 = vlaneseq
      %v2253 = vshrl.u32 %v2252, 7
      %v2254 = vsub.s32 %v2155, %v2253
      %v2255 = vrot.slane %v2036, %v2254
      %v2256 = vlaneseq
      %v2257 = vshrl.u32 %v2256, 7
      %v2258 = vsub.s32 %v2155, %v2257
      %v2259 = vrot.slane %v2039, %v2258
      %v2260 = vlaneseq
      %v2261 = vshrl.u32 %v2260, 7
      %v2262 = vsub.s32 %v2155, %v2261
      %v2263 = vrot.slane %v2042, %v2262
      %v2264 = vlaneseq
      %v2265 = vshrl.u32 %v2264, 7
      %v2266 = vsub.s32 %v2155, %v2265
      %v2267 = vrot.slane %v2045, %v2266
      %v2268 = vlaneseq
      %v2269 = vshrl.u32 %v2268, 7
      %v2270 = vsub.s32 %v2155, %v2269
      %v2271 = vrot.slane %v2048, %v2270
      %v2272 = vlaneseq
      %v2273 = vshrl.u32 %v2272, 7
      %v2274 = vsub.s32 %v2155, %v2273
      %v2275 = vrot.slane %v2051, %v2274
      %v2276 = vlaneseq
      %v2277 = vshrl.u32 %v2276, 7
      %v2278 = vsub.s32 %v2155, %v2277
      %v2279 = vrot.slane %v2054, %v2278
      %v2280 = vlaneseq
      %v2281 = vshrl.u32 %v2280, 7
      %v2282 = vsub.s32 %v2155, %v2281
      %v2283 = vrot.slane %v2057, %v2282
      %v2284 = vlaneseq
      %v2285 = vshrl.u32 %v2284, 7
      %v2286 = vsub.s32 %v2155, %v2285
      %v2287 = vrot.slane %v2060, %v2286
      %v2288 = vlaneseq
      %v2289 = vshrl.u32 %v2288, 7
      %v2290 = vsub.s32 %v2155, %v2289
      %v2291 = vrot.slane %v2063, %v2290
      %v2292 = vlaneseq
      %v2293 = vshrl.u32 %v2292, 7
      %v2294 = vsub.s32 %v2155, %v2293
      %v2295 = vrot.slane %v2066, %v2294
      %v2296 = vlaneseq
      %v2297 = vshrl.u32 %v2296, 7
      %v2298 = vsub.s32 %v2155, %v2297
      %v2299 = vrot.slane %v2069, %v2298
      %v2300 = vlaneseq
      %v2301 = vshrl.u32 %v2300, 7
      %v2302 = vsub.s32 %v2155, %v2301
      %v2303 = vrot.slane %v2072, %v2302
      %v2304 = vlaneseq
      %v2305 = vshrl.u32 %v2304, 7
      %v2306 = vsub.s32 %v2155, %v2305
      %v2307 = vrot.slane %v2075, %v2306
      %v2308 = vlaneseq
      %v2309 = vshrl.u32 %v2308, 7
      %v2310 = vsub.s32 %v2155, %v2309
      %v2311 = vrot.slane %v2078, %v2310
      %v2312 = vlaneseq
      %v2313 = vshrl.u32 %v2312, 7
      %v2314 = vsub.s32 %v2155, %v2313
      %v2315 = vrot.slane %v2081, %v2314
      %v2316 = vlaneseq
      %v2317 = vshrl.u32 %v2316, 7
      %v2318 = vsub.s32 %v2155, %v2317
      %v2319 = vrot.slane %v2084, %v2318
      %v2320 = vlaneseq
      %v2321 = vshrl.u32 %v2320, 7
      %v2322 = vsub.s32 %v2155, %v2321
      %v2323 = vrot.slane %v2087, %v2322
      %v2324 = vlaneseq
      %v2325 = vshrl.u32 %v2324, 7
      %v2326 = vsub.s32 %v2155, %v2325
      %v2327 = vrot.slane %v2090, %v2326
      %v2328 = vlaneseq
      %v2329 = vshrl.u32 %v2328, 7
      %v2330 = vsub.s32 %v2155, %v2329
      %v2331 = vrot.slane %v2093, %v2330
      %v2332 = vlaneseq
      %v2333 = vshrl.u32 %v2332, 7
      %v2334 = vsub.s32 %v2155, %v2333
      %v2335 = vrot.slane %v2096, %v2334
      %v2336 = vlaneseq
      %v2337 = vshrl.u32 %v2336, 7
      %v2338 = vsub.s32 %v2155, %v2337
      %v2339 = vrot.slane %v2099, %v2338
      %v2340 = vlaneseq
      %v2341 = vshrl.u32 %v2340, 7
      %v2342 = vsub.s32 %v2155, %v2341
      %v2343 = vrot.slane %v2102, %v2342
      %v2344 = vlaneseq
      %v2345 = vshrl.u32 %v2344, 7
      %v2346 = vsub.s32 %v2155, %v2345
      %v2347 = vrot.slane %v2105, %v2346
      %v2348 = vlaneseq
      %v2349 = vshrl.u32 %v2348, 7
      %v2350 = vsub.s32 %v2155, %v2349
      %v2351 = vrot.slane %v2108, %v2350
      %v2352 = vlaneseq
      %v2353 = vshrl.u32 %v2352, 7
      %v2354 = vsub.s32 %v2155, %v2353
      %v2355 = vrot.slane %v2111, %v2354
      %v2356 = vlaneseq
      %v2357 = vshrl.u32 %v2356, 7
      %v2358 = vsub.s32 %v2155, %v2357
      %v2359 = vrot.slane %v2114, %v2358
      %v2360 = vlaneseq
      %v2361 = vshrl.u32 %v2360, 7
      %v2362 = vsub.s32 %v2155, %v2361
      %v2363 = vrot.slane %v2117, %v2362
      %v2364 = vlaneseq
      %v2365 = vshrl.u32 %v2364, 7
      %v2366 = vsub.s32 %v2155, %v2365
      %v2367 = vrot.slane %v2120, %v2366
      %v2368 = vlaneseq
      %v2369 = vshrl.u32 %v2368, 7
      %v2370 = vsub.s32 %v2155, %v2369
      %v2371 = vrot.slane %v2123, %v2370
      %v2372 = vlaneseq
      %v2373 = vshrl.u32 %v2372, 7
      %v2374 = vsub.s32 %v2155, %v2373
      %v2375 = vrot.slane %v2126, %v2374
      %v2376 = vlaneseq
      %v2377 = vshrl.u32 %v2376, 7
      %v2378 = vsub.s32 %v2155, %v2377
      %v2379 = vrot.slane %v2129, %v2378
      %v2380 = vlaneseq
      %v2381 = vshrl.u32 %v2380, 7
      %v2382 = vsub.s32 %v2155, %v2381
      %v2383 = vrot.slane %v2132, %v2382
      %v2384 = vlaneseq
      %v2385 = vshrl.u32 %v2384, 7
      %v2386 = vsub.s32 %v2155, %v2385
      %v2387 = vrot.slane %v2135, %v2386
      %v2388 = vlaneseq
      %v2389 = vshrl.u32 %v2388, 7
      %v2390 = vsub.s32 %v2155, %v2389
      %v2391 = vrot.slane %v2138, %v2390
      %v2392 = vlaneseq
      %v2393 = vshrl.u32 %v2392, 7
      %v2394 = vsub.s32 %v2155, %v2393
      %v2395 = vrot.slane %v2141, %v2394
      %v2396 = vlaneseq
      %v2397 = vshrl.u32 %v2396, 7
      %v2398 = vsub.s32 %v2155, %v2397
      %v2399 = vrot.slane %v2144, %v2398
      %v2400 = vlaneseq
      %v2401 = vshrl.u32 %v2400, 7
      %v2402 = vsub.s32 %v2155, %v2401
      %v2403 = vrot.slane %v2147, %v2402
      %v2404 = vlaneseq
      %v2405 = vshrl.u32 %v2404, 7
      %v2406 = vsub.s32 %v2155, %v2405
      %v2407 = vrot.slane %v2150, %v2406
      %v2408 = vlaneseq
      %v2409 = vshrl.u32 %v2408, 7
      %v2410 = vsub.s32 %v2155, %v2409
      %v2411 = vrot.slane %v2153, %v2410
      %vm2412 = vcmask 1041409
      %v2413 = vsel %vm2412, %v2163, %v2159
      %vm2414 = vcmask 1042434
      %v2415 = vsel %vm2414, %v2167, %v2413
      %vm2416 = vcmask 1043459
      %v2417 = vsel %vm2416, %v2171, %v2415
      %vm2418 = vcmask 1044484
      %v2419 = vsel %vm2418, %v2175, %v2417
      %vm2420 = vcmask 1045509
      %v2421 = vsel %vm2420, %v2179, %v2419
      %vm2422 = vcmask 1046534
      %v2423 = vsel %vm2422, %v2183, %v2421
      %vm2424 = vcmask 1047559
      %v2425 = vsel %vm2424, %v2187, %v2423
      %v2426 = vsel %vm2412, %v2195, %v2191
      %v2427 = vsel %vm2414, %v2199, %v2426
      %v2428 = vsel %vm2416, %v2203, %v2427
      %v2429 = vsel %vm2418, %v2207, %v2428
      %v2430 = vsel %vm2420, %v2211, %v2429
      %v2431 = vsel %vm2422, %v2215, %v2430
      %v2432 = vsel %vm2424, %v2219, %v2431
      %v2433 = vsel %vm2412, %v2227, %v2223
      %v2434 = vsel %vm2414, %v2231, %v2433
      %v2435 = vsel %vm2416, %v2235, %v2434
      %v2436 = vsel %vm2418, %v2239, %v2435
      %v2437 = vsel %vm2420, %v2243, %v2436
      %v2438 = vsel %vm2422, %v2247, %v2437
      %v2439 = vsel %vm2424, %v2251, %v2438
      %v2440 = vsel %vm2412, %v2259, %v2255
      %v2441 = vsel %vm2414, %v2263, %v2440
      %v2442 = vsel %vm2416, %v2267, %v2441
      %v2443 = vsel %vm2418, %v2271, %v2442
      %v2444 = vsel %vm2420, %v2275, %v2443
      %v2445 = vsel %vm2422, %v2279, %v2444
      %v2446 = vsel %vm2424, %v2283, %v2445
      %v2447 = vsel %vm2412, %v2291, %v2287
      %v2448 = vsel %vm2414, %v2295, %v2447
      %v2449 = vsel %vm2416, %v2299, %v2448
      %v2450 = vsel %vm2418, %v2303, %v2449
      %v2451 = vsel %vm2420, %v2307, %v2450
      %v2452 = vsel %vm2422, %v2311, %v2451
      %v2453 = vsel %vm2424, %v2315, %v2452
      %v2454 = vsel %vm2412, %v2323, %v2319
      %v2455 = vsel %vm2414, %v2327, %v2454
      %v2456 = vsel %vm2416, %v2331, %v2455
      %v2457 = vsel %vm2418, %v2335, %v2456
      %v2458 = vsel %vm2420, %v2339, %v2457
      %v2459 = vsel %vm2422, %v2343, %v2458
      %v2460 = vsel %vm2424, %v2347, %v2459
      %v2461 = vsel %vm2412, %v2355, %v2351
      %v2462 = vsel %vm2414, %v2359, %v2461
      %v2463 = vsel %vm2416, %v2363, %v2462
      %v2464 = vsel %vm2418, %v2367, %v2463
      %v2465 = vsel %vm2420, %v2371, %v2464
      %v2466 = vsel %vm2422, %v2375, %v2465
      %v2467 = vsel %vm2424, %v2379, %v2466
      %v2468 = vsel %vm2412, %v2387, %v2383
      %v2469 = vsel %vm2414, %v2391, %v2468
      %v2470 = vsel %vm2416, %v2395, %v2469
      %v2471 = vsel %vm2418, %v2399, %v2470
      %v2472 = vsel %vm2420, %v2403, %v2471
      %v2473 = vsel %vm2422, %v2407, %v2472
      %v2474 = vsel %vm2424, %v2411, %v2473
      %vm2483 = vcmask 64512
      %2484 = vst.msk [vmem:[%s167] sm:$0xff] %vm2483, %v2425
      %2485 = vst.msk [vmem:[%s167 + $0x8] sm:$0xff] %vm2483, %v2432
      %2486 = vst.msk [vmem:[%s167 + $0x10] sm:$0xff] %vm2483, %v2439
      %2487 = vst.msk [vmem:[%s167 + $0x18] sm:$0xff] %vm2483, %v2446
      %2488 = vst.msk [vmem:[%s167 + $0x20] sm:$0xff] %vm2483, %v2453
      %2489 = vst.msk [vmem:[%s167 + $0x28] sm:$0xff] %vm2483, %v2460
      %2490 = vst.msk [vmem:[%s167 + $0x30] sm:$0xff] %vm2483, %v2467
      %2491 = vst.msk [vmem:[%s167 + $0x38] sm:$0xff] %vm2483, %v2474
      %s2492 = smul.u32 8, %s13
      %p2493 = scmp.lt.s32.totalorder %s2492, 15
      %s2494 = scalar_select %p2493, %s2492, 15
      %s2495 = smul.addr %s2494, 8
      %s2496 = scalar_lea.vmem %s2, %s2495
      // Predicated region
      $region29: #{get_Q_pallas.1} parent=27 // pred_check
        %p2497 = pneg %p83
      $region30: #{get_Q_pallas.1} parent=27 // pred_check_branch
        %2499 = sbr.rel (%p2497) target = $region32
      $region31: #{get_Q_pallas.1} parent=27 // pred_region
        %s2500 = smul.u32 8, %s13
      $region32: #{get_Q_pallas.1} parent=27 // pred_fallthru
        _
    $region28: #{get_Q_pallas.1} parent=5 // pred_fallthru
      _
    %p2501 = scmp.le.s32.totalorder 2, %s8
    // Predicated region
    $region33: #{get_Q_pallas.1} parent=5 // pred_check
      %p2502 = pneg %p2501
    $region34: #{get_Q_pallas.1} parent=5 // pred_check_branch
      %2504 = sbr.rel (%p2502) target = $region36
    $region35: #{get_Q_pallas.1} parent=5 // pred_region
      %s2505 = ssub.s32 %s8, 2
      // Predicated region
      $region37: #{get_Q_pallas.1} parent=35 // pred_check
        %p2506 = pneg %p89
      $region38: #{get_Q_pallas.1} parent=35 // pred_check_branch
        %2508 = sbr.rel (%p2506) target = $region40
      $region39: #{get_Q_pallas.1} parent=35 // pred_region
        %s2509 = smul.u32 8, %s14
        %p2510 = scmp.lt.s32.totalorder %s2509, 15
        %s2511 = scalar_select %p2510, %s2509, 15
        %s2512 = smul.addr %s2511, 8
        %s2513 = scalar_lea.vmem %s2, %s2512
      $region40: #{get_Q_pallas.1} parent=35 // pred_fallthru
        _
    $region36: #{get_Q_pallas.1} parent=5 // pred_fallthru
      _
  $region6: #{get_Q_pallas.1} parent=0 // loop_footer
    %s12 = sadd.s32 1, %s8
  $region7: #{get_Q_pallas.1} parent=0 // loop_footer_branch
    %7 = sbr.rel target = $region3
  $region8: #{get_Q_pallas.1} parent=0 // loop_exit
    _

</llo_original>
